<compile_context>
chip_gen: v6e
topology: v6e:2x2x1
jax: 0.10.0
libtpu: 0.0.40
codegen_flags: <defaults>
</compile_context>

<pallas_src>
import jax
import jax.numpy as jnp
from jax.experimental import pallas as pl
from jax.experimental.pallas import tpu as pltpu

LANE = 128          # pad class dim to a multiple of this for lane-dense stores
NEG_PAD = -1e30     # bias value for padded classes -> softmax weight exactly 0


# ----------------------------------------------------------------------------
# Pallas kernel: fused [GEMM + bias + softmax] over normalization-folded weights
# ----------------------------------------------------------------------------
def core_model_kernel(x_ref, w_ref, b_ref, logits_ref, probs_ref):
    # x_ref      : [TN, D]  bf16 flattened image batch tile (D = C*H*W)
    # w_ref      : [D, Kp]  bf16 normalization-folded classifier weight (padded)
    # b_ref      : [1, Kp]  f32 folded bias (padded lanes = NEG_PAD)
    # logits_ref : [TN, Kp] f32 logits (padded lanes ~ NEG_PAD; sliced by wrapper)
    # probs_ref  : [TN, Kp] f32 softmax probabilities (padded lanes = 0)
    logits = jnp.dot(x_ref[...], w_ref[...],
                     preferred_element_type=jnp.float32) + b_ref[...]
    logits_ref[...] = logits

    # Fused, numerically stable softmax epilogue (padded lanes underflow to 0).
    m = jnp.max(logits, axis=-1, keepdims=True)
    e = jnp.exp(logits - m)
    denom = jnp.sum(e, axis=-1, keepdims=True)
    probs_ref[...] = e * pl.reciprocal(denom, approx=True)


# ----------------------------------------------------------------------------
# One-time parameter preparation (fold normalization, pad, cast)
# ----------------------------------------------------------------------------
def fold_classifier_params(mean_c, std_c, w, b):
    """Fold Normalize(mean, std) into the linear classifier (exact algebra).

    ((x - mean) * istd) @ W + b  ==  x @ (istd[:,None] * W) + (b - (mean*istd) @ W)

    Also pads the class dim to a multiple of 128 and casts W' to bf16.
    Returns (w_folded_bf16 [D,Kp], b_folded_padded_f32 [1,Kp], num_classes K).
    """
    C = mean_c.shape[0]
    D, K = w.shape
    hw = D // C
    istd = 1.0 / std_c
    istd_vec = jnp.repeat(istd, hw)          # [D] per-pixel 1/std (NCHW order)
    mean_vec = jnp.repeat(mean_c, hw)        # [D] per-pixel mean
    w_folded = w * istd_vec[:, None]                       # [D, K]
    b_folded = b - (mean_vec * istd_vec) @ w               # [K]

    Kp = ((K + LANE - 1) // LANE) * LANE
    w_p = jnp.zeros((D, Kp), jnp.float32).at[:, :K].set(w_folded)
    b_p = jnp.full((1, Kp), NEG_PAD, jnp.float32).at[0, :K].set(b_folded)
    return w_p.astype(jnp.bfloat16), b_p, K


def _batch_tiling(n):
    """Pad batch to a sublane multiple; tile it if it grows large."""
    if n <= 128:
        n_pad = max(8, ((n + 7) // 8) * 8)
        return n_pad, n_pad            # single grid step
    n_pad = ((n + 127) // 128) * 128
    return n_pad, 128                  # 128-row tiles, parallel over grid


# ----------------------------------------------------------------------------
# Kernel launch wrapper
# ----------------------------------------------------------------------------
def _core_model_call(x_nchw, w_folded, b_folded):
    N = x_nchw.shape[0]
    D, Kp = w_folded.shape
    Np, TN = _batch_tiling(N)

    x_flat = x_nchw.reshape(N, D).astype(jnp.bfloat16)
    if Np != N:
        x_flat = jnp.pad(x_flat, ((0, Np - N), (0, 0)))

    cost = pl.CostEstimate(
        flops=2 * Np * D * Kp,
        transcendentals=Np * Kp,
        bytes_accessed=2 * Np * D + 2 * D * Kp + 4 * Kp + 2 * 4 * Np * Kp,
    )

    logits_p, probs_p = pl.pallas_call(
        core_model_kernel,
        out_shape=(jax.ShapeDtypeStruct((Np, Kp), jnp.float32),
                   jax.ShapeDtypeStruct((Np, Kp), jnp.float32)),
        grid_spec=pltpu.PrefetchScalarGridSpec(
            num_scalar_prefetch=0,
            grid=(Np // TN,),
            in_specs=[
                pl.BlockSpec((TN, D), lambda i: (i, 0)),
                pl.BlockSpec((D, Kp), lambda i: (0, 0)),
                pl.BlockSpec((1, Kp), lambda i: (0, 0)),
            ],
            out_specs=[
                pl.BlockSpec((TN, Kp), lambda i: (i, 0)),
                pl.BlockSpec((TN, Kp), lambda i: (i, 0)),
            ],
        ),
        compiler_params=pltpu.CompilerParams(
            dimension_semantics=("parallel",)),
        cost_estimate=cost,
    )(x_flat, w_folded, b_folded)
    return logits_p, probs_p, N


def core_model_forward(x_nchw, w_folded, b_folded, num_classes):
    """CoreModel.forward: (normalize + classify), normalization folded into W'."""
    logits_p, _, n = _core_model_call(x_nchw, w_folded, b_folded)
    return logits_p[:n, :num_classes]


def inference_prob(x_nchw, w_folded, b_folded, num_classes):
    """CoreModel.inference_prob: softmax fused into the kernel epilogue."""
    _, probs_p, n = _core_model_call(x_nchw, w_folded, b_folded)
    return probs_p[:n, :num_classes]


# ----------------------------------------------------------------------------
# Driver
# ----------------------------------------------------------------------------
if __name__ == "__main__":
    # CIFAR-10 configuration from CoreModel.__init__
    NUM_CLASSES = 10
    C, H, W = 3, 32, 32
    N = 8
    D = C * H * W

    # cls_norm = Normalize(mean, std) -- standard CIFAR-10 statistics.
    mean_c = jnp.array([0.4914, 0.4822, 0.4465], dtype=jnp.float32)
    std_c = jnp.array([0.2470, 0.2435, 0.2616], dtype=jnp.float32)

    # Deterministic synthetic classifier parameters (linear head).
    key = jax.random.PRNGKey(0)
    kx, kw, kb = jax.random.split(key, 3)
    w = jax.random.normal(kw, (D, NUM_CLASSES), dtype=jnp.float32) * 0.02
    b = jax.random.normal(kb, (NUM_CLASSES,), dtype=jnp.float32) * 0.01

    # One-time setup: fold normalization into weights, pad, cast to bf16.
    w_folded, b_folded, K = fold_classifier_params(mean_c, std_c, w, b)

    # Input image batch in [0, 1], NCHW.
    x = jax.random.uniform(kx, (N, C, H, W), dtype=jnp.float32)

    logits = core_model_forward(x, w_folded, b_folded, K)
    probs = inference_prob(x, w_folded, b_folded, K)
    jax.block_until_ready((logits, probs))

    # ---- Pure-JAX reference (same bf16 quantization as the kernel inputs) ----
    x_flat_bf16 = x.reshape(N, D).astype(jnp.bfloat16).astype(jnp.float32)
    w_bf16 = w_folded[:, :K].astype(jnp.float32)
    b_ref = b_folded[0, :K]
    ref_logits = x_flat_bf16 @ w_bf16 + b_ref[None, :]
    ref_probs = jax.nn.softmax(ref_logits, axis=-1)

    assert logits.shape == (N, NUM_CLASSES)
    assert probs.shape == (N, NUM_CLASSES)
    assert jnp.allclose(logits, ref_logits, atol=1e-2, rtol=1e-2), "logits mismatch"
    assert jnp.allclose(probs, ref_probs, atol=2e-2, rtol=2e-2), "probs mismatch"
    # probs over real classes must sum to 1 (padded lanes carry exactly 0 mass)
    assert jnp.allclose(jnp.sum(probs, axis=-1), 1.0, atol=3e-3), "softmax mass"

    print("KERNEL_OK")
</pallas_src>

<mosaic_0001>
module attributes {stable_mosaic.version = 11 : i64} {
  func.func @core_model_kernel(%arg0: i32, %arg1: memref<8x3072xbf16, #tpu.memory_space<vmem>>, %arg2: memref<3072x128xbf16, #tpu.memory_space<vmem>>, %arg3: memref<1x128xf32, #tpu.memory_space<vmem>>, %arg4: memref<8x128xf32, #tpu.memory_space<vmem>>, %arg5: memref<8x128xf32, #tpu.memory_space<vmem>>) attributes {dimension_semantics = [#tpu.dimension_semantics<parallel>], iteration_bounds = array<i64: 1>, scalar_prefetch = 0 : i64, scratch_operands = 0 : i64, tpu.core_type = #tpu.core_type<tc>, window_params = [{transform_indices = @transform_0, window_bounds = array<i64: 8, 3072>}, {pipeline_mode = #tpu.pipeline_mode<synchronous>, transform_indices = @transform_1, window_bounds = array<i64: 3072, 128>}, {pipeline_mode = #tpu.pipeline_mode<synchronous>, transform_indices = @transform_2, window_bounds = array<i64: 1, 128>}, {transform_indices = @transform_3, window_bounds = array<i64: 8, 128>}, {transform_indices = @transform_4, window_bounds = array<i64: 8, 128>}]} {
    %c0 = arith.constant 0 : index
    %c0_0 = arith.constant 0 : index
    %0 = vector.load %arg1[%c0, %c0_0] : memref<8x3072xbf16, #tpu.memory_space<vmem>>, vector<8x3072xbf16>
    %c0_1 = arith.constant 0 : index
    %c0_2 = arith.constant 0 : index
    %1 = vector.load %arg2[%c0_1, %c0_2] : memref<3072x128xbf16, #tpu.memory_space<vmem>>, vector<3072x128xbf16>
    %cst = arith.constant dense<0.000000e+00> : vector<8x128xf32>
    %2 = tpu.matmul %0, %1, %cst {dimension_numbers = #tpu.dot_dimension_numbers<[1], [0], [0], [1], [0, 0, 1, 1], [], []>} : vector<8x3072xbf16>, vector<3072x128xbf16>, vector<8x128xf32> -> vector<8x128xf32>
    %c0_3 = arith.constant 0 : index
    %c0_4 = arith.constant 0 : index
    %3 = vector.load %arg3[%c0_3, %c0_4] : memref<1x128xf32, #tpu.memory_space<vmem>>, vector<1x128xf32>
    %4 = vector.broadcast %3 : vector<1x128xf32> to vector<8x128xf32>
    %5 = arith.addf %2, %4 : vector<8x128xf32>
    %c0_5 = arith.constant 0 : index
    %c0_6 = arith.constant 0 : index
    %6 = vector.load %arg4[%c0_5, %c0_6] : memref<8x128xf32, #tpu.memory_space<vmem>>, vector<8x128xf32>
    tpu.vector_store %arg4[%c0_5, %c0_6], %5 {strides = array<i32>} : memref<8x128xf32, #tpu.memory_space<vmem>>, vector<8x128xf32>,
    %cst_7 = arith.constant dense<0xFF800000> : vector<8xf32>
    %7 = vector.multi_reduction <maximumf>, %5, %cst_7 [1] : vector<8x128xf32> to vector<8xf32>
    %8 = vector.shape_cast %7 : vector<8xf32> to vector<8x1xf32>
    %9 = vector.broadcast %8 : vector<8x1xf32> to vector<8x128xf32>
    %10 = arith.subf %5, %9 : vector<8x128xf32>
    %11 = math.exp %10 : vector<8x128xf32>
    %cst_8 = arith.constant dense<0.000000e+00> : vector<8xf32>
    %12 = vector.multi_reduction <add>, %11, %cst_8 [1] : vector<8x128xf32> to vector<8xf32>
    %13 = vector.shape_cast %12 : vector<8xf32> to vector<8x1xf32>
    %14 = tpu.reciprocal %13 {approx = true} : vector<8x1xf32> -> vector<8x1xf32>
    %15 = vector.broadcast %14 : vector<8x1xf32> to vector<8x128xf32>
    %16 = arith.mulf %11, %15 : vector<8x128xf32>
    %c0_9 = arith.constant 0 : index
    %c0_10 = arith.constant 0 : index
    %17 = vector.load %arg5[%c0_9, %c0_10] : memref<8x128xf32, #tpu.memory_space<vmem>>, vector<8x128xf32>
    tpu.vector_store %arg5[%c0_9, %c0_10], %16 {strides = array<i32>} : memref<8x128xf32, #tpu.memory_space<vmem>>, vector<8x128xf32>,
    return
  }
  func.func @transform_0(%arg0: i32) -> (i32, i32) {
    %c0_i32 = arith.constant 0 : i32
    %c0_i32_0 = arith.constant 0 : i32
    return %arg0, %c0_i32 : i32, i32
  }
  func.func @transform_1(%arg0: i32) -> (i32, i32) {
    %c0_i32 = arith.constant 0 : i32
    %c0_i32_0 = arith.constant 0 : i32
    %c0_i32_1 = arith.constant 0 : i32
    return %c0_i32, %c0_i32_0 : i32, i32
  }
  func.func @transform_2(%arg0: i32) -> (i32, i32) {
    %c0_i32 = arith.constant 0 : i32
    %c0_i32_0 = arith.constant 0 : i32
    %c0_i32_1 = arith.constant 0 : i32
    return %c0_i32, %c0_i32_0 : i32, i32
  }
  func.func @transform_3(%arg0: i32) -> (i32, i32) {
    %c0_i32 = arith.constant 0 : i32
    %c0_i32_0 = arith.constant 0 : i32
    return %arg0, %c0_i32 : i32, i32
  }
  func.func @transform_4(%arg0: i32) -> (i32, i32) {
    %c0_i32 = arith.constant 0 : i32
    %c0_i32_0 = arith.constant 0 : i32
    return %arg0, %c0_i32 : i32, i32
  }
}

</mosaic_0001>

<llo_original>
// kernel: tpu_custom_call.1
$region0: #{tpu_custom_call.1}
  #allocation0 [shape = 'u32[]', space=smem, size = 0x4, offset = 0x4, fixed_abs, tag = 'smem constant byte address 0x4 - core index']
  #allocation1 [shape = 'u32[144,128]{1,0:T(1,128)}', space=vmem, size = 0x12000, scoped, tag = 'internal scratch']
  %s0 = inlined_call_operand.hbm [shape: bf16[8,3072], index: 0, kind: input, shape index: {}]
  %s1 = inlined_call_operand.hbm [shape: bf16[3072,128], index: 1, kind: input, shape index: {}]
  %s2 = inlined_call_operand.vmem [shape: f32[1,128], index: 2, kind: input, shape index: {}]
  %s3 = inlined_call_operand.hbm [shape: f32[8,128], index: 3, kind: output, shape index: {0}]
  %s4 = inlined_call_operand.hbm [shape: f32[8,128], index: 4, kind: output, shape index: {1}]
  %5 = xla_tuple %s3, %s4
  %s6 = sld [smem:[#allocation0]]
  $region38: #{tpu_custom_call.1} parent=0
    _
  %s8 = ssub.s32 1, %s6
  %s9 = scalar_select 0, %s8, %s6
  $region1: #{tpu_custom_call.1} parent=0
    #allocation2 [shape = 'u8[49152]{0}', space=vmem, size = 0xc000, scoped, tag = 'input window, operand 0, single buffered']
    #allocation3 [shape = 's32[1]{0}', space=sflag, size = 0x4, scoped, tag = 'scoped memory for tpu_custom_call.1']
    #allocation4 [shape = 's32[1]{0}', space=sflag, size = 0x4, scoped, tag = 'scoped memory for tpu_custom_call.1']
    #allocation5 [shape = 'u8[786432]{0}', space=vmem, size = 0xc0000, scoped, tag = 'input window, operand 1, single buffered']
    #allocation6 [shape = 's32[1]{0}', space=sflag, size = 0x4, scoped, tag = 'scoped memory for tpu_custom_call.1']
    #allocation7 [shape = 'u8[4096]{0}', space=vmem, size = 0x1000, scoped, tag = 'output window, operand 0, single buffered']
    #allocation8 [shape = 'u8[4096]{0}', space=vmem, size = 0x1000, scoped, tag = 'output window, operand 1, single buffered']
    #allocation9 [shape = 's32[1]{0}', space=sflag, size = 0x4, scoped, tag = 'scoped memory for tpu_custom_call.1']
    %10 = vsyncpa [#allocation3], 0
    %11 = vsyncpa [#allocation6], 0
    %12 = vsyncpa [#allocation4], 0
    %13 = vsyncpa [#allocation9], 0
    // Predicated region
    $region2: #{tpu_custom_call.1} parent=1 // pred_check
      _
    $region3: #{tpu_custom_call.1} parent=1 // pred_check_branch
      %15 = sbr.rel (0) target = $region5
    $region4: #{tpu_custom_call.1} parent=1 // pred_region
      %s17 = ssub.s32 1536, 1536
      %18 = vsyncadd [#allocation3], %s17
      %s20 = sshll.u32 [#allocation2], 4
      %s21 = int_to_ptr.vmem [resolvable:$true] %s20
      %23 = dma.hbm_to_vmem [thread:$0]  %s0, 1536, %s21, [#allocation3]
    $region5: #{tpu_custom_call.1} parent=1 // pred_fallthru
      _
    // Predicated region
    $region6: #{tpu_custom_call.1} parent=1 // pred_check
      _
    $region7: #{tpu_custom_call.1} parent=1 // pred_check_branch
      %25 = sbr.rel (0) target = $region9
    $region8: #{tpu_custom_call.1} parent=1 // pred_region
      %s27 = ssub.s32 24576, 24576
      %28 = vsyncadd [#allocation6], %s27
      %s29 = sshll.u32 [#allocation5], 4
      %s30 = int_to_ptr.vmem [resolvable:$true] %s29
      %35 = dma.hbm_to_vmem [thread:$0]  %s1, 24576, %s30, [#allocation6], 64, 64, 4
    $region9: #{tpu_custom_call.1} parent=1 // pred_fallthru
      _
    // Predicated region
    $region10: #{tpu_custom_call.1} parent=1 // pred_check
      _
    $region11: #{tpu_custom_call.1} parent=1 // pred_check_branch
      %37 = sbr.rel (0) target = $region13
    $region12: #{tpu_custom_call.1} parent=1 // pred_region
      _
    $region13: #{tpu_custom_call.1} parent=1 // pred_fallthru
      _
    // Predicated region
    $region14: #{tpu_custom_call.1} parent=1 // pred_check
      _
    $region15: #{tpu_custom_call.1} parent=1 // pred_check_branch
      %39 = sbr.rel (0) target = $region17
    $region16: #{tpu_custom_call.1} parent=1 // pred_region
      %40 = dma.done [#allocation3], 1536
    $region17: #{tpu_custom_call.1} parent=1 // pred_fallthru
      _
    // Predicated region
    $region18: #{tpu_custom_call.1} parent=1 // pred_check
      _
    $region19: #{tpu_custom_call.1} parent=1 // pred_check_branch
      %42 = sbr.rel (0) target = $region21
    $region20: #{tpu_custom_call.1} parent=1 // pred_region
      %43 = dma.done [#allocation6], 24576
    $region21: #{tpu_custom_call.1} parent=1 // pred_fallthru
      _
    %v45 = vld [vmem:[#allocation2] sm:$0xff]
    %v46 = vld [vmem:[#allocation2 + $0x8] sm:$0xff]
    %v47 = vld [vmem:[#allocation2 + $0x10] sm:$0xff]
    %v48 = vld [vmem:[#allocation2 + $0x18] sm:$0xff]
    %v49 = vld [vmem:[#allocation2 + $0x20] sm:$0xff]
    %v50 = vld [vmem:[#allocation2 + $0x28] sm:$0xff]
    %v51 = vld [vmem:[#allocation2 + $0x30] sm:$0xff]
    %v52 = vld [vmem:[#allocation2 + $0x38] sm:$0xff]
    %v53 = vld [vmem:[#allocation2 + $0x40] sm:$0xff]
    %v54 = vld [vmem:[#allocation2 + $0x48] sm:$0xff]
    %v55 = vld [vmem:[#allocation2 + $0x50] sm:$0xff]
    %v56 = vld [vmem:[#allocation2 + $0x58] sm:$0xff]
    %v57 = vld [vmem:[#allocation5] sm:$0xf]
    %v58 = vld [vmem:[#allocation5 + $0x4] sm:$0xf]
    %v59 = vld [vmem:[#allocation5 + $0x8] sm:$0xf]
    %v60 = vld [vmem:[#allocation5 + $0xc] sm:$0xf]
    %v61 = vld [vmem:[#allocation5 + $0x10] sm:$0xf]
    %v62 = vld [vmem:[#allocation5 + $0x14] sm:$0xf]
    %v63 = vld [vmem:[#allocation5 + $0x18] sm:$0xf]
    %v64 = vld [vmem:[#allocation5 + $0x1c] sm:$0xf]
    %v65 = vld [vmem:[#allocation5 + $0x20] sm:$0xf]
    %v66 = vld [vmem:[#allocation5 + $0x24] sm:$0xf]
    %v67 = vld [vmem:[#allocation5 + $0x28] sm:$0xf]
    %v68 = vld [vmem:[#allocation5 + $0x2c] sm:$0xf]
    %v69 = vld [vmem:[#allocation5 + $0x30] sm:$0xf]
    %v70 = vld [vmem:[#allocation5 + $0x34] sm:$0xf]
    %v71 = vld [vmem:[#allocation5 + $0x38] sm:$0xf]
    %v72 = vld [vmem:[#allocation5 + $0x3c] sm:$0xf]
    %v73 = vld [vmem:[#allocation5 + $0x40] sm:$0xf]
    %v74 = vld [vmem:[#allocation5 + $0x44] sm:$0xf]
    %v75 = vld [vmem:[#allocation5 + $0x48] sm:$0xf]
    %v76 = vld [vmem:[#allocation5 + $0x4c] sm:$0xf]
    %v77 = vld [vmem:[#allocation5 + $0x50] sm:$0xf]
    %v78 = vld [vmem:[#allocation5 + $0x54] sm:$0xf]
    %v79 = vld [vmem:[#allocation5 + $0x58] sm:$0xf]
    %v80 = vld [vmem:[#allocation5 + $0x5c] sm:$0xf]
    %v81 = vld [vmem:[#allocation5 + $0x60] sm:$0xf]
    %v82 = vld [vmem:[#allocation5 + $0x64] sm:$0xf]
    %v83 = vld [vmem:[#allocation5 + $0x68] sm:$0xf]
    %v84 = vld [vmem:[#allocation5 + $0x6c] sm:$0xf]
    %v85 = vld [vmem:[#allocation5 + $0x70] sm:$0xf]
    %v86 = vld [vmem:[#allocation5 + $0x74] sm:$0xf]
    %v87 = vld [vmem:[#allocation5 + $0x78] sm:$0xf]
    %v88 = vld [vmem:[#allocation5 + $0x7c] sm:$0xf]
    %v89 = vld [vmem:[#allocation5 + $0x80] sm:$0xf]
    %v90 = vld [vmem:[#allocation5 + $0x84] sm:$0xf]
    %v91 = vld [vmem:[#allocation5 + $0x88] sm:$0xf]
    %v92 = vld [vmem:[#allocation5 + $0x8c] sm:$0xf]
    %v93 = vld [vmem:[#allocation5 + $0x90] sm:$0xf]
    %v94 = vld [vmem:[#allocation5 + $0x94] sm:$0xf]
    %v95 = vld [vmem:[#allocation5 + $0x98] sm:$0xf]
    %v96 = vld [vmem:[#allocation5 + $0x9c] sm:$0xf]
    %v97 = vld [vmem:[#allocation5 + $0xa0] sm:$0xf]
    %v98 = vld [vmem:[#allocation5 + $0xa4] sm:$0xf]
    %v99 = vld [vmem:[#allocation5 + $0xa8] sm:$0xf]
    %v100 = vld [vmem:[#allocation5 + $0xac] sm:$0xf]
    %v101 = vld [vmem:[#allocation5 + $0xb0] sm:$0xf]
    %v102 = vld [vmem:[#allocation5 + $0xb4] sm:$0xf]
    %v103 = vld [vmem:[#allocation5 + $0xb8] sm:$0xf]
    %v104 = vld [vmem:[#allocation5 + $0xbc] sm:$0xf]
    %v105 = vld [vmem:[#allocation5 + $0xc0] sm:$0xf]
    %v106 = vld [vmem:[#allocation5 + $0xc4] sm:$0xf]
    %v107 = vld [vmem:[#allocation5 + $0xc8] sm:$0xf]
    %v108 = vld [vmem:[#allocation5 + $0xcc] sm:$0xf]
    %v109 = vld [vmem:[#allocation5 + $0xd0] sm:$0xf]
    %v110 = vld [vmem:[#allocation5 + $0xd4] sm:$0xf]
    %v111 = vld [vmem:[#allocation5 + $0xd8] sm:$0xf]
    %v112 = vld [vmem:[#allocation5 + $0xdc] sm:$0xf]
    %v113 = vld [vmem:[#allocation5 + $0xe0] sm:$0xf]
    %v114 = vld [vmem:[#allocation5 + $0xe4] sm:$0xf]
    %v115 = vld [vmem:[#allocation5 + $0xe8] sm:$0xf]
    %v116 = vld [vmem:[#allocation5 + $0xec] sm:$0xf]
    %v117 = vld [vmem:[#allocation5 + $0xf0] sm:$0xf]
    %v118 = vld [vmem:[#allocation5 + $0xf4] sm:$0xf]
    %v119 = vld [vmem:[#allocation5 + $0xf8] sm:$0xf]
    %v120 = vld [vmem:[#allocation5 + $0xfc] sm:$0xf]
    %v121 = vld [vmem:[#allocation5 + $0x100] sm:$0xf]
    %v122 = vld [vmem:[#allocation5 + $0x104] sm:$0xf]
    %v123 = vld [vmem:[#allocation5 + $0x108] sm:$0xf]
    %v124 = vld [vmem:[#allocation5 + $0x10c] sm:$0xf]
    %v125 = vld [vmem:[#allocation5 + $0x110] sm:$0xf]
    %v126 = vld [vmem:[#allocation5 + $0x114] sm:$0xf]
    %v127 = vld [vmem:[#allocation5 + $0x118] sm:$0xf]
    %v128 = vld [vmem:[#allocation5 + $0x11c] sm:$0xf]
    %v129 = vld [vmem:[#allocation5 + $0x120] sm:$0xf]
    %v130 = vld [vmem:[#allocation5 + $0x124] sm:$0xf]
    %v131 = vld [vmem:[#allocation5 + $0x128] sm:$0xf]
    %v132 = vld [vmem:[#allocation5 + $0x12c] sm:$0xf]
    %v133 = vld [vmem:[#allocation5 + $0x130] sm:$0xf]
    %v134 = vld [vmem:[#allocation5 + $0x134] sm:$0xf]
    %v135 = vld [vmem:[#allocation5 + $0x138] sm:$0xf]
    %v136 = vld [vmem:[#allocation5 + $0x13c] sm:$0xf]
    %v137 = vld [vmem:[#allocation5 + $0x140] sm:$0xf]
    %v138 = vld [vmem:[#allocation5 + $0x144] sm:$0xf]
    %v139 = vld [vmem:[#allocation5 + $0x148] sm:$0xf]
    %v140 = vld [vmem:[#allocation5 + $0x14c] sm:$0xf]
    %v141 = vld [vmem:[#allocation5 + $0x150] sm:$0xf]
    %v142 = vld [vmem:[#allocation5 + $0x154] sm:$0xf]
    %v143 = vld [vmem:[#allocation5 + $0x158] sm:$0xf]
    %v144 = vld [vmem:[#allocation5 + $0x15c] sm:$0xf]
    %v145 = vld [vmem:[#allocation5 + $0x160] sm:$0xf]
    %v146 = vld [vmem:[#allocation5 + $0x164] sm:$0xf]
    %v147 = vld [vmem:[#allocation5 + $0x168] sm:$0xf]
    %v148 = vld [vmem:[#allocation5 + $0x16c] sm:$0xf]
    %v149 = vld [vmem:[#allocation5 + $0x170] sm:$0xf]
    %v150 = vld [vmem:[#allocation5 + $0x174] sm:$0xf]
    %v151 = vld [vmem:[#allocation5 + $0x178] sm:$0xf]
    %v152 = vld [vmem:[#allocation5 + $0x17c] sm:$0xf]
    %v153 = vld [vmem:[#allocation5 + $0x180] sm:$0xf]
    %v154 = vld [vmem:[#allocation5 + $0x184] sm:$0xf]
    %v155 = vld [vmem:[#allocation5 + $0x188] sm:$0xf]
    %v156 = vld [vmem:[#allocation5 + $0x18c] sm:$0xf]
    %v157 = vld [vmem:[#allocation5 + $0x190] sm:$0xf]
    %v158 = vld [vmem:[#allocation5 + $0x194] sm:$0xf]
    %v159 = vld [vmem:[#allocation5 + $0x198] sm:$0xf]
    %v160 = vld [vmem:[#allocation5 + $0x19c] sm:$0xf]
    %v161 = vld [vmem:[#allocation5 + $0x1a0] sm:$0xf]
    %v162 = vld [vmem:[#allocation5 + $0x1a4] sm:$0xf]
    %v163 = vld [vmem:[#allocation5 + $0x1a8] sm:$0xf]
    %v164 = vld [vmem:[#allocation5 + $0x1ac] sm:$0xf]
    %v165 = vld [vmem:[#allocation5 + $0x1b0] sm:$0xf]
    %v166 = vld [vmem:[#allocation5 + $0x1b4] sm:$0xf]
    %v167 = vld [vmem:[#allocation5 + $0x1b8] sm:$0xf]
    %v168 = vld [vmem:[#allocation5 + $0x1bc] sm:$0xf]
    %v169 = vld [vmem:[#allocation5 + $0x1c0] sm:$0xf]
    %v170 = vld [vmem:[#allocation5 + $0x1c4] sm:$0xf]
    %v171 = vld [vmem:[#allocation5 + $0x1c8] sm:$0xf]
    %v172 = vld [vmem:[#allocation5 + $0x1cc] sm:$0xf]
    %v173 = vld [vmem:[#allocation5 + $0x1d0] sm:$0xf]
    %v174 = vld [vmem:[#allocation5 + $0x1d4] sm:$0xf]
    %v175 = vld [vmem:[#allocation5 + $0x1d8] sm:$0xf]
    %v176 = vld [vmem:[#allocation5 + $0x1dc] sm:$0xf]
    %v177 = vld [vmem:[#allocation5 + $0x1e0] sm:$0xf]
    %v178 = vld [vmem:[#allocation5 + $0x1e4] sm:$0xf]
    %v179 = vld [vmem:[#allocation5 + $0x1e8] sm:$0xf]
    %v180 = vld [vmem:[#allocation5 + $0x1ec] sm:$0xf]
    %v181 = vld [vmem:[#allocation5 + $0x1f0] sm:$0xf]
    %v182 = vld [vmem:[#allocation5 + $0x1f4] sm:$0xf]
    %v183 = vld [vmem:[#allocation5 + $0x1f8] sm:$0xf]
    %v184 = vld [vmem:[#allocation5 + $0x1fc] sm:$0xf]
    %v185 = vld [vmem:[#allocation5 + $0x200] sm:$0xf]
    %v186 = vld [vmem:[#allocation5 + $0x204] sm:$0xf]
    %v187 = vld [vmem:[#allocation5 + $0x208] sm:$0xf]
    %v188 = vld [vmem:[#allocation5 + $0x20c] sm:$0xf]
    %v189 = vld [vmem:[#allocation5 + $0x210] sm:$0xf]
    %v190 = vld [vmem:[#allocation5 + $0x214] sm:$0xf]
    %v191 = vld [vmem:[#allocation5 + $0x218] sm:$0xf]
    %v192 = vld [vmem:[#allocation5 + $0x21c] sm:$0xf]
    %v193 = vld [vmem:[#allocation5 + $0x220] sm:$0xf]
    %v194 = vld [vmem:[#allocation5 + $0x224] sm:$0xf]
    %v195 = vld [vmem:[#allocation5 + $0x228] sm:$0xf]
    %v196 = vld [vmem:[#allocation5 + $0x22c] sm:$0xf]
    %v197 = vld [vmem:[#allocation5 + $0x230] sm:$0xf]
    %v198 = vld [vmem:[#allocation5 + $0x234] sm:$0xf]
    %v199 = vld [vmem:[#allocation5 + $0x238] sm:$0xf]
    %v200 = vld [vmem:[#allocation5 + $0x23c] sm:$0xf]
    %v201 = vld [vmem:[#allocation5 + $0x240] sm:$0xf]
    %v202 = vld [vmem:[#allocation5 + $0x244] sm:$0xf]
    %v203 = vld [vmem:[#allocation5 + $0x248] sm:$0xf]
    %v204 = vld [vmem:[#allocation5 + $0x24c] sm:$0xf]
    %v205 = vld [vmem:[#allocation5 + $0x250] sm:$0xf]
    %v206 = vld [vmem:[#allocation5 + $0x254] sm:$0xf]
    %v207 = vld [vmem:[#allocation5 + $0x258] sm:$0xf]
    %v208 = vld [vmem:[#allocation5 + $0x25c] sm:$0xf]
    %v209 = vld [vmem:[#allocation5 + $0x260] sm:$0xf]
    %v210 = vld [vmem:[#allocation5 + $0x264] sm:$0xf]
    %v211 = vld [vmem:[#allocation5 + $0x268] sm:$0xf]
    %v212 = vld [vmem:[#allocation5 + $0x26c] sm:$0xf]
    %v213 = vld [vmem:[#allocation5 + $0x270] sm:$0xf]
    %v214 = vld [vmem:[#allocation5 + $0x274] sm:$0xf]
    %v215 = vld [vmem:[#allocation5 + $0x278] sm:$0xf]
    %v216 = vld [vmem:[#allocation5 + $0x27c] sm:$0xf]
    %v217 = vld [vmem:[#allocation5 + $0x280] sm:$0xf]
    %v218 = vld [vmem:[#allocation5 + $0x284] sm:$0xf]
    %v219 = vld [vmem:[#allocation5 + $0x288] sm:$0xf]
    %v220 = vld [vmem:[#allocation5 + $0x28c] sm:$0xf]
    %v221 = vld [vmem:[#allocation5 + $0x290] sm:$0xf]
    %v222 = vld [vmem:[#allocation5 + $0x294] sm:$0xf]
    %v223 = vld [vmem:[#allocation5 + $0x298] sm:$0xf]
    %v224 = vld [vmem:[#allocation5 + $0x29c] sm:$0xf]
    %v225 = vld [vmem:[#allocation5 + $0x2a0] sm:$0xf]
    %v226 = vld [vmem:[#allocation5 + $0x2a4] sm:$0xf]
    %v227 = vld [vmem:[#allocation5 + $0x2a8] sm:$0xf]
    %v228 = vld [vmem:[#allocation5 + $0x2ac] sm:$0xf]
    %v229 = vld [vmem:[#allocation5 + $0x2b0] sm:$0xf]
    %v230 = vld [vmem:[#allocation5 + $0x2b4] sm:$0xf]
    %v231 = vld [vmem:[#allocation5 + $0x2b8] sm:$0xf]
    %v232 = vld [vmem:[#allocation5 + $0x2bc] sm:$0xf]
    %v233 = vld [vmem:[#allocation5 + $0x2c0] sm:$0xf]
    %v234 = vld [vmem:[#allocation5 + $0x2c4] sm:$0xf]
    %v235 = vld [vmem:[#allocation5 + $0x2c8] sm:$0xf]
    %v236 = vld [vmem:[#allocation5 + $0x2cc] sm:$0xf]
    %v237 = vld [vmem:[#allocation5 + $0x2d0] sm:$0xf]
    %v238 = vld [vmem:[#allocation5 + $0x2d4] sm:$0xf]
    %v239 = vld [vmem:[#allocation5 + $0x2d8] sm:$0xf]
    %v240 = vld [vmem:[#allocation5 + $0x2dc] sm:$0xf]
    %v241 = vld [vmem:[#allocation5 + $0x2e0] sm:$0xf]
    %v242 = vld [vmem:[#allocation5 + $0x2e4] sm:$0xf]
    %v243 = vld [vmem:[#allocation5 + $0x2e8] sm:$0xf]
    %v244 = vld [vmem:[#allocation5 + $0x2ec] sm:$0xf]
    %v245 = vld [vmem:[#allocation5 + $0x2f0] sm:$0xf]
    %v246 = vld [vmem:[#allocation5 + $0x2f4] sm:$0xf]
    %v247 = vld [vmem:[#allocation5 + $0x2f8] sm:$0xf]
    %v248 = vld [vmem:[#allocation5 + $0x2fc] sm:$0xf]
    %v249 = vld [vmem:[#allocation5 + $0x300] sm:$0xf]
    %v250 = vld [vmem:[#allocation5 + $0x304] sm:$0xf]
    %v251 = vld [vmem:[#allocation5 + $0x308] sm:$0xf]
    %v252 = vld [vmem:[#allocation5 + $0x30c] sm:$0xf]
    %v253 = vld [vmem:[#allocation5 + $0x310] sm:$0xf]
    %v254 = vld [vmem:[#allocation5 + $0x314] sm:$0xf]
    %v255 = vld [vmem:[#allocation5 + $0x318] sm:$0xf]
    %v256 = vld [vmem:[#allocation5 + $0x31c] sm:$0xf]
    %v257 = vld [vmem:[#allocation5 + $0x320] sm:$0xf]
    %v258 = vld [vmem:[#allocation5 + $0x324] sm:$0xf]
    %v259 = vld [vmem:[#allocation5 + $0x328] sm:$0xf]
    %v260 = vld [vmem:[#allocation5 + $0x32c] sm:$0xf]
    %v261 = vld [vmem:[#allocation5 + $0x330] sm:$0xf]
    %v262 = vld [vmem:[#allocation5 + $0x334] sm:$0xf]
    %v263 = vld [vmem:[#allocation5 + $0x338] sm:$0xf]
    %v264 = vld [vmem:[#allocation5 + $0x33c] sm:$0xf]
    %v265 = vld [vmem:[#allocation5 + $0x340] sm:$0xf]
    %v266 = vld [vmem:[#allocation5 + $0x344] sm:$0xf]
    %v267 = vld [vmem:[#allocation5 + $0x348] sm:$0xf]
    %v268 = vld [vmem:[#allocation5 + $0x34c] sm:$0xf]
    %v269 = vld [vmem:[#allocation5 + $0x350] sm:$0xf]
    %v270 = vld [vmem:[#allocation5 + $0x354] sm:$0xf]
    %v271 = vld [vmem:[#allocation5 + $0x358] sm:$0xf]
    %v272 = vld [vmem:[#allocation5 + $0x35c] sm:$0xf]
    %v273 = vld [vmem:[#allocation5 + $0x360] sm:$0xf]
    %v274 = vld [vmem:[#allocation5 + $0x364] sm:$0xf]
    %v275 = vld [vmem:[#allocation5 + $0x368] sm:$0xf]
    %v276 = vld [vmem:[#allocation5 + $0x36c] sm:$0xf]
    %v277 = vld [vmem:[#allocation5 + $0x370] sm:$0xf]
    %v278 = vld [vmem:[#allocation5 + $0x374] sm:$0xf]
    %v279 = vld [vmem:[#allocation5 + $0x378] sm:$0xf]
    %v280 = vld [vmem:[#allocation5 + $0x37c] sm:$0xf]
    %v281 = vld [vmem:[#allocation5 + $0x380] sm:$0xf]
    %v282 = vld [vmem:[#allocation5 + $0x384] sm:$0xf]
    %v283 = vld [vmem:[#allocation5 + $0x388] sm:$0xf]
    %v284 = vld [vmem:[#allocation5 + $0x38c] sm:$0xf]
    %v285 = vld [vmem:[#allocation5 + $0x390] sm:$0xf]
    %v286 = vld [vmem:[#allocation5 + $0x394] sm:$0xf]
    %v287 = vld [vmem:[#allocation5 + $0x398] sm:$0xf]
    %v288 = vld [vmem:[#allocation5 + $0x39c] sm:$0xf]
    %v289 = vld [vmem:[#allocation5 + $0x3a0] sm:$0xf]
    %v290 = vld [vmem:[#allocation5 + $0x3a4] sm:$0xf]
    %v291 = vld [vmem:[#allocation5 + $0x3a8] sm:$0xf]
    %v292 = vld [vmem:[#allocation5 + $0x3ac] sm:$0xf]
    %v293 = vld [vmem:[#allocation5 + $0x3b0] sm:$0xf]
    %v294 = vld [vmem:[#allocation5 + $0x3b4] sm:$0xf]
    %v295 = vld [vmem:[#allocation5 + $0x3b8] sm:$0xf]
    %v296 = vld [vmem:[#allocation5 + $0x3bc] sm:$0xf]
    %v297 = vld [vmem:[#allocation5 + $0x3c0] sm:$0xf]
    %v298 = vld [vmem:[#allocation5 + $0x3c4] sm:$0xf]
    %v299 = vld [vmem:[#allocation5 + $0x3c8] sm:$0xf]
    %v300 = vld [vmem:[#allocation5 + $0x3cc] sm:$0xf]
    %v301 = vld [vmem:[#allocation5 + $0x3d0] sm:$0xf]
    %v302 = vld [vmem:[#allocation5 + $0x3d4] sm:$0xf]
    %v303 = vld [vmem:[#allocation5 + $0x3d8] sm:$0xf]
    %v304 = vld [vmem:[#allocation5 + $0x3dc] sm:$0xf]
    %v305 = vld [vmem:[#allocation5 + $0x3e0] sm:$0xf]
    %v306 = vld [vmem:[#allocation5 + $0x3e4] sm:$0xf]
    %v307 = vld [vmem:[#allocation5 + $0x3e8] sm:$0xf]
    %v308 = vld [vmem:[#allocation5 + $0x3ec] sm:$0xf]
    %v309 = vld [vmem:[#allocation5 + $0x3f0] sm:$0xf]
    %v310 = vld [vmem:[#allocation5 + $0x3f4] sm:$0xf]
    %v311 = vld [vmem:[#allocation5 + $0x3f8] sm:$0xf]
    %v312 = vld [vmem:[#allocation5 + $0x3fc] sm:$0xf]
    %v313 = vld [vmem:[#allocation5 + $0x400] sm:$0xf]
    %v314 = vld [vmem:[#allocation5 + $0x404] sm:$0xf]
    %v315 = vld [vmem:[#allocation5 + $0x408] sm:$0xf]
    %v316 = vld [vmem:[#allocation5 + $0x40c] sm:$0xf]
    %v317 = vld [vmem:[#allocation5 + $0x410] sm:$0xf]
    %v318 = vld [vmem:[#allocation5 + $0x414] sm:$0xf]
    %v319 = vld [vmem:[#allocation5 + $0x418] sm:$0xf]
    %v320 = vld [vmem:[#allocation5 + $0x41c] sm:$0xf]
    %v321 = vld [vmem:[#allocation5 + $0x420] sm:$0xf]
    %v322 = vld [vmem:[#allocation5 + $0x424] sm:$0xf]
    %v323 = vld [vmem:[#allocation5 + $0x428] sm:$0xf]
    %v324 = vld [vmem:[#allocation5 + $0x42c] sm:$0xf]
    %v325 = vld [vmem:[#allocation5 + $0x430] sm:$0xf]
    %v326 = vld [vmem:[#allocation5 + $0x434] sm:$0xf]
    %v327 = vld [vmem:[#allocation5 + $0x438] sm:$0xf]
    %v328 = vld [vmem:[#allocation5 + $0x43c] sm:$0xf]
    %v329 = vld [vmem:[#allocation5 + $0x440] sm:$0xf]
    %v330 = vld [vmem:[#allocation5 + $0x444] sm:$0xf]
    %v331 = vld [vmem:[#allocation5 + $0x448] sm:$0xf]
    %v332 = vld [vmem:[#allocation5 + $0x44c] sm:$0xf]
    %v333 = vld [vmem:[#allocation5 + $0x450] sm:$0xf]
    %v334 = vld [vmem:[#allocation5 + $0x454] sm:$0xf]
    %v335 = vld [vmem:[#allocation5 + $0x458] sm:$0xf]
    %v336 = vld [vmem:[#allocation5 + $0x45c] sm:$0xf]
    %v337 = vld [vmem:[#allocation5 + $0x460] sm:$0xf]
    %v338 = vld [vmem:[#allocation5 + $0x464] sm:$0xf]
    %v339 = vld [vmem:[#allocation5 + $0x468] sm:$0xf]
    %v340 = vld [vmem:[#allocation5 + $0x46c] sm:$0xf]
    %v341 = vld [vmem:[#allocation5 + $0x470] sm:$0xf]
    %v342 = vld [vmem:[#allocation5 + $0x474] sm:$0xf]
    %v343 = vld [vmem:[#allocation5 + $0x478] sm:$0xf]
    %v344 = vld [vmem:[#allocation5 + $0x47c] sm:$0xf]
    %v345 = vld [vmem:[#allocation5 + $0x480] sm:$0xf]
    %v346 = vld [vmem:[#allocation5 + $0x484] sm:$0xf]
    %v347 = vld [vmem:[#allocation5 + $0x488] sm:$0xf]
    %v348 = vld [vmem:[#allocation5 + $0x48c] sm:$0xf]
    %v349 = vld [vmem:[#allocation5 + $0x490] sm:$0xf]
    %v350 = vld [vmem:[#allocation5 + $0x494] sm:$0xf]
    %v351 = vld [vmem:[#allocation5 + $0x498] sm:$0xf]
    %v352 = vld [vmem:[#allocation5 + $0x49c] sm:$0xf]
    %v353 = vld [vmem:[#allocation5 + $0x4a0] sm:$0xf]
    %v354 = vld [vmem:[#allocation5 + $0x4a4] sm:$0xf]
    %v355 = vld [vmem:[#allocation5 + $0x4a8] sm:$0xf]
    %v356 = vld [vmem:[#allocation5 + $0x4ac] sm:$0xf]
    %v357 = vld [vmem:[#allocation5 + $0x4b0] sm:$0xf]
    %v358 = vld [vmem:[#allocation5 + $0x4b4] sm:$0xf]
    %v359 = vld [vmem:[#allocation5 + $0x4b8] sm:$0xf]
    %v360 = vld [vmem:[#allocation5 + $0x4bc] sm:$0xf]
    %v361 = vld [vmem:[#allocation5 + $0x4c0] sm:$0xf]
    %v362 = vld [vmem:[#allocation5 + $0x4c4] sm:$0xf]
    %v363 = vld [vmem:[#allocation5 + $0x4c8] sm:$0xf]
    %v364 = vld [vmem:[#allocation5 + $0x4cc] sm:$0xf]
    %v365 = vld [vmem:[#allocation5 + $0x4d0] sm:$0xf]
    %v366 = vld [vmem:[#allocation5 + $0x4d4] sm:$0xf]
    %v367 = vld [vmem:[#allocation5 + $0x4d8] sm:$0xf]
    %v368 = vld [vmem:[#allocation5 + $0x4dc] sm:$0xf]
    %v369 = vld [vmem:[#allocation5 + $0x4e0] sm:$0xf]
    %v370 = vld [vmem:[#allocation5 + $0x4e4] sm:$0xf]
    %v371 = vld [vmem:[#allocation5 + $0x4e8] sm:$0xf]
    %v372 = vld [vmem:[#allocation5 + $0x4ec] sm:$0xf]
    %v373 = vld [vmem:[#allocation5 + $0x4f0] sm:$0xf]
    %v374 = vld [vmem:[#allocation5 + $0x4f4] sm:$0xf]
    %v375 = vld [vmem:[#allocation5 + $0x4f8] sm:$0xf]
    %v376 = vld [vmem:[#allocation5 + $0x4fc] sm:$0xf]
    %v377 = vld [vmem:[#allocation5 + $0x500] sm:$0xf]
    %v378 = vld [vmem:[#allocation5 + $0x504] sm:$0xf]
    %v379 = vld [vmem:[#allocation5 + $0x508] sm:$0xf]
    %v380 = vld [vmem:[#allocation5 + $0x50c] sm:$0xf]
    %v381 = vld [vmem:[#allocation5 + $0x510] sm:$0xf]
    %v382 = vld [vmem:[#allocation5 + $0x514] sm:$0xf]
    %v383 = vld [vmem:[#allocation5 + $0x518] sm:$0xf]
    %v384 = vld [vmem:[#allocation5 + $0x51c] sm:$0xf]
    %v385 = vld [vmem:[#allocation5 + $0x520] sm:$0xf]
    %v386 = vld [vmem:[#allocation5 + $0x524] sm:$0xf]
    %v387 = vld [vmem:[#allocation5 + $0x528] sm:$0xf]
    %v388 = vld [vmem:[#allocation5 + $0x52c] sm:$0xf]
    %v389 = vld [vmem:[#allocation5 + $0x530] sm:$0xf]
    %v390 = vld [vmem:[#allocation5 + $0x534] sm:$0xf]
    %v391 = vld [vmem:[#allocation5 + $0x538] sm:$0xf]
    %v392 = vld [vmem:[#allocation5 + $0x53c] sm:$0xf]
    %v393 = vld [vmem:[#allocation5 + $0x540] sm:$0xf]
    %v394 = vld [vmem:[#allocation5 + $0x544] sm:$0xf]
    %v395 = vld [vmem:[#allocation5 + $0x548] sm:$0xf]
    %v396 = vld [vmem:[#allocation5 + $0x54c] sm:$0xf]
    %v397 = vld [vmem:[#allocation5 + $0x550] sm:$0xf]
    %v398 = vld [vmem:[#allocation5 + $0x554] sm:$0xf]
    %v399 = vld [vmem:[#allocation5 + $0x558] sm:$0xf]
    %v400 = vld [vmem:[#allocation5 + $0x55c] sm:$0xf]
    %v401 = vld [vmem:[#allocation5 + $0x560] sm:$0xf]
    %v402 = vld [vmem:[#allocation5 + $0x564] sm:$0xf]
    %v403 = vld [vmem:[#allocation5 + $0x568] sm:$0xf]
    %v404 = vld [vmem:[#allocation5 + $0x56c] sm:$0xf]
    %v405 = vld [vmem:[#allocation5 + $0x570] sm:$0xf]
    %v406 = vld [vmem:[#allocation5 + $0x574] sm:$0xf]
    %v407 = vld [vmem:[#allocation5 + $0x578] sm:$0xf]
    %v408 = vld [vmem:[#allocation5 + $0x57c] sm:$0xf]
    %v409 = vld [vmem:[#allocation5 + $0x580] sm:$0xf]
    %v410 = vld [vmem:[#allocation5 + $0x584] sm:$0xf]
    %v411 = vld [vmem:[#allocation5 + $0x588] sm:$0xf]
    %v412 = vld [vmem:[#allocation5 + $0x58c] sm:$0xf]
    %v413 = vld [vmem:[#allocation5 + $0x590] sm:$0xf]
    %v414 = vld [vmem:[#allocation5 + $0x594] sm:$0xf]
    %v415 = vld [vmem:[#allocation5 + $0x598] sm:$0xf]
    %v416 = vld [vmem:[#allocation5 + $0x59c] sm:$0xf]
    %v417 = vld [vmem:[#allocation5 + $0x5a0] sm:$0xf]
    %v418 = vld [vmem:[#allocation5 + $0x5a4] sm:$0xf]
    %v419 = vld [vmem:[#allocation5 + $0x5a8] sm:$0xf]
    %v420 = vld [vmem:[#allocation5 + $0x5ac] sm:$0xf]
    %v421 = vld [vmem:[#allocation5 + $0x5b0] sm:$0xf]
    %v422 = vld [vmem:[#allocation5 + $0x5b4] sm:$0xf]
    %v423 = vld [vmem:[#allocation5 + $0x5b8] sm:$0xf]
    %v424 = vld [vmem:[#allocation5 + $0x5bc] sm:$0xf]
    %v425 = vld [vmem:[#allocation5 + $0x5c0] sm:$0xf]
    %v426 = vld [vmem:[#allocation5 + $0x5c4] sm:$0xf]
    %v427 = vld [vmem:[#allocation5 + $0x5c8] sm:$0xf]
    %v428 = vld [vmem:[#allocation5 + $0x5cc] sm:$0xf]
    %v429 = vld [vmem:[#allocation5 + $0x5d0] sm:$0xf]
    %v430 = vld [vmem:[#allocation5 + $0x5d4] sm:$0xf]
    %v431 = vld [vmem:[#allocation5 + $0x5d8] sm:$0xf]
    %v432 = vld [vmem:[#allocation5 + $0x5dc] sm:$0xf]
    %v433 = vld [vmem:[#allocation5 + $0x5e0] sm:$0xf]
    %v434 = vld [vmem:[#allocation5 + $0x5e4] sm:$0xf]
    %v435 = vld [vmem:[#allocation5 + $0x5e8] sm:$0xf]
    %v436 = vld [vmem:[#allocation5 + $0x5ec] sm:$0xf]
    %v437 = vld [vmem:[#allocation5 + $0x5f0] sm:$0xf]
    %v438 = vld [vmem:[#allocation5 + $0x5f4] sm:$0xf]
    %v439 = vld [vmem:[#allocation5 + $0x5f8] sm:$0xf]
    %v440 = vld [vmem:[#allocation5 + $0x5fc] sm:$0xf]
    %v441 = vld [vmem:[%s2] sm:$0x1]
    %v443 = vlaneseq
    %v444 = vshrl.u32 %v443, 7
    %v445 = vsub.s32 0, %v444
    %v446 = vrot.slane %v441, %v445
    %v460 = vunpack.c.l.b16 %v45
    %v461 = vunpack.c.h.b16 %v45
    %v462 = vunpack.c.l.b16 %v46
    %v463 = vunpack.c.h.b16 %v46
    %v464 = vunpack.c.l.b16 %v47
    %v465 = vunpack.c.h.b16 %v47
    %v466 = vunpack.c.l.b16 %v48
    %v467 = vunpack.c.h.b16 %v48
    %v468 = vunpack.c.l.b16 %v49
    %v469 = vunpack.c.h.b16 %v49
    %v470 = vunpack.c.l.b16 %v50
    %v471 = vunpack.c.h.b16 %v50
    %v472 = vunpack.c.l.b16 %v51
    %v473 = vunpack.c.h.b16 %v51
    %v474 = vunpack.c.l.b16 %v52
    %v475 = vunpack.c.h.b16 %v52
    %v476 = vunpack.c.l.b16 %v53
    %v477 = vunpack.c.h.b16 %v53
    %v478 = vunpack.c.l.b16 %v54
    %v479 = vunpack.c.h.b16 %v54
    %v480 = vunpack.c.l.b16 %v55
    %v481 = vunpack.c.h.b16 %v55
    %v482 = vunpack.c.l.b16 %v56
    %v483 = vunpack.c.h.b16 %v56
    %v484 = vpack.c.b16 %v460, %v460
    %v485 = vpack.c.b16 %v461, %v461
    %v486 = vpack.c.b16 %v462, %v462
    %v487 = vpack.c.b16 %v463, %v463
    %v488 = vpack.c.b16 %v464, %v464
    %v489 = vpack.c.b16 %v465, %v465
    %v490 = vpack.c.b16 %v466, %v466
    %v491 = vpack.c.b16 %v467, %v467
    %v492 = vpack.c.b16 %v468, %v468
    %v493 = vpack.c.b16 %v469, %v469
    %v494 = vpack.c.b16 %v470, %v470
    %v495 = vpack.c.b16 %v471, %v471
    %v496 = vpack.c.b16 %v472, %v472
    %v497 = vpack.c.b16 %v473, %v473
    %v498 = vpack.c.b16 %v474, %v474
    %v499 = vpack.c.b16 %v475, %v475
    %v500 = vpack.c.b16 %v476, %v476
    %v501 = vpack.c.b16 %v477, %v477
    %v502 = vpack.c.b16 %v478, %v478
    %v503 = vpack.c.b16 %v479, %v479
    %v504 = vpack.c.b16 %v480, %v480
    %v505 = vpack.c.b16 %v481, %v481
    %v506 = vpack.c.b16 %v482, %v482
    %v507 = vpack.c.b16 %v483, %v483
    %v916 = vunpack.c.l.b16 %v57
    %v917 = vunpack.c.l.b16 %v58
    %v918 = vunpack.c.l.b16 %v59
    %v919 = vunpack.c.l.b16 %v60
    %v920 = vunpack.c.l.b16 %v61
    %v921 = vunpack.c.l.b16 %v62
    %v922 = vunpack.c.l.b16 %v63
    %v923 = vunpack.c.l.b16 %v64
    %v924 = vunpack.c.l.b16 %v65
    %v925 = vunpack.c.l.b16 %v66
    %v926 = vunpack.c.l.b16 %v67
    %v927 = vunpack.c.l.b16 %v68
    %v928 = vunpack.c.l.b16 %v69
    %v929 = vunpack.c.l.b16 %v70
    %v930 = vunpack.c.l.b16 %v71
    %v931 = vunpack.c.l.b16 %v72
    %v932 = vunpack.c.l.b16 %v73
    %v933 = vunpack.c.l.b16 %v74
    %v934 = vunpack.c.l.b16 %v75
    %v935 = vunpack.c.l.b16 %v76
    %v936 = vunpack.c.l.b16 %v77
    %v937 = vunpack.c.l.b16 %v78
    %v938 = vunpack.c.l.b16 %v79
    %v939 = vunpack.c.l.b16 %v80
    %v940 = vunpack.c.l.b16 %v81
    %v941 = vunpack.c.l.b16 %v82
    %v942 = vunpack.c.l.b16 %v83
    %v943 = vunpack.c.l.b16 %v84
    %v944 = vunpack.c.l.b16 %v85
    %v945 = vunpack.c.l.b16 %v86
    %v946 = vunpack.c.l.b16 %v87
    %v947 = vunpack.c.l.b16 %v88
    %v948 = vunpack.c.l.b16 %v89
    %v949 = vunpack.c.l.b16 %v90
    %v950 = vunpack.c.l.b16 %v91
    %v951 = vunpack.c.l.b16 %v92
    %v952 = vunpack.c.l.b16 %v93
    %v953 = vunpack.c.l.b16 %v94
    %v954 = vunpack.c.l.b16 %v95
    %v955 = vunpack.c.l.b16 %v96
    %v956 = vunpack.c.l.b16 %v97
    %v957 = vunpack.c.l.b16 %v98
    %v958 = vunpack.c.l.b16 %v99
    %v959 = vunpack.c.l.b16 %v100
    %v960 = vunpack.c.l.b16 %v101
    %v961 = vunpack.c.l.b16 %v102
    %v962 = vunpack.c.l.b16 %v103
    %v963 = vunpack.c.l.b16 %v104
    %v964 = vunpack.c.l.b16 %v105
    %v965 = vunpack.c.l.b16 %v106
    %v966 = vunpack.c.l.b16 %v107
    %v967 = vunpack.c.l.b16 %v108
    %v968 = vunpack.c.l.b16 %v109
    %v969 = vunpack.c.l.b16 %v110
    %v970 = vunpack.c.l.b16 %v111
    %v971 = vunpack.c.l.b16 %v112
    %v972 = vunpack.c.l.b16 %v113
    %v973 = vunpack.c.l.b16 %v114
    %v974 = vunpack.c.l.b16 %v115
    %v975 = vunpack.c.l.b16 %v116
    %v976 = vunpack.c.l.b16 %v117
    %v977 = vunpack.c.l.b16 %v118
    %v978 = vunpack.c.l.b16 %v119
    %v979 = vunpack.c.l.b16 %v120
    %v980 = vunpack.c.l.b16 %v121
    %v981 = vunpack.c.l.b16 %v122
    %v982 = vunpack.c.l.b16 %v123
    %v983 = vunpack.c.l.b16 %v124
    %v984 = vunpack.c.l.b16 %v125
    %v985 = vunpack.c.l.b16 %v126
    %v986 = vunpack.c.l.b16 %v127
    %v987 = vunpack.c.l.b16 %v128
    %v988 = vunpack.c.l.b16 %v129
    %v989 = vunpack.c.l.b16 %v130
    %v990 = vunpack.c.l.b16 %v131
    %v991 = vunpack.c.l.b16 %v132
    %v992 = vunpack.c.l.b16 %v133
    %v993 = vunpack.c.l.b16 %v134
    %v994 = vunpack.c.l.b16 %v135
    %v995 = vunpack.c.l.b16 %v136
    %v996 = vunpack.c.l.b16 %v137
    %v997 = vunpack.c.l.b16 %v138
    %v998 = vunpack.c.l.b16 %v139
    %v999 = vunpack.c.l.b16 %v140
    %v1000 = vunpack.c.l.b16 %v141
    %v1001 = vunpack.c.l.b16 %v142
    %v1002 = vunpack.c.l.b16 %v143
    %v1003 = vunpack.c.l.b16 %v144
    %v1004 = vunpack.c.l.b16 %v145
    %v1005 = vunpack.c.l.b16 %v146
    %v1006 = vunpack.c.l.b16 %v147
    %v1007 = vunpack.c.l.b16 %v148
    %v1008 = vunpack.c.l.b16 %v149
    %v1009 = vunpack.c.l.b16 %v150
    %v1010 = vunpack.c.l.b16 %v151
    %v1011 = vunpack.c.l.b16 %v152
    %v1012 = vunpack.c.l.b16 %v153
    %v1013 = vunpack.c.l.b16 %v154
    %v1014 = vunpack.c.l.b16 %v155
    %v1015 = vunpack.c.l.b16 %v156
    %v1016 = vunpack.c.l.b16 %v157
    %v1017 = vunpack.c.l.b16 %v158
    %v1018 = vunpack.c.l.b16 %v159
    %v1019 = vunpack.c.l.b16 %v160
    %v1020 = vunpack.c.l.b16 %v161
    %v1021 = vunpack.c.l.b16 %v162
    %v1022 = vunpack.c.l.b16 %v163
    %v1023 = vunpack.c.l.b16 %v164
    %v1024 = vunpack.c.l.b16 %v165
    %v1025 = vunpack.c.l.b16 %v166
    %v1026 = vunpack.c.l.b16 %v167
    %v1027 = vunpack.c.l.b16 %v168
    %v1028 = vunpack.c.l.b16 %v169
    %v1029 = vunpack.c.l.b16 %v170
    %v1030 = vunpack.c.l.b16 %v171
    %v1031 = vunpack.c.l.b16 %v172
    %v1032 = vunpack.c.l.b16 %v173
    %v1033 = vunpack.c.l.b16 %v174
    %v1034 = vunpack.c.l.b16 %v175
    %v1035 = vunpack.c.l.b16 %v176
    %v1036 = vunpack.c.l.b16 %v177
    %v1037 = vunpack.c.l.b16 %v178
    %v1038 = vunpack.c.l.b16 %v179
    %v1039 = vunpack.c.l.b16 %v180
    %v1040 = vunpack.c.l.b16 %v181
    %v1041 = vunpack.c.l.b16 %v182
    %v1042 = vunpack.c.l.b16 %v183
    %v1043 = vunpack.c.l.b16 %v184
    %v1044 = vunpack.c.l.b16 %v185
    %v1045 = vunpack.c.l.b16 %v186
    %v1046 = vunpack.c.l.b16 %v187
    %v1047 = vunpack.c.l.b16 %v188
    %v1048 = vunpack.c.l.b16 %v189
    %v1049 = vunpack.c.l.b16 %v190
    %v1050 = vunpack.c.l.b16 %v191
    %v1051 = vunpack.c.l.b16 %v192
    %v1052 = vunpack.c.l.b16 %v193
    %v1053 = vunpack.c.l.b16 %v194
    %v1054 = vunpack.c.l.b16 %v195
    %v1055 = vunpack.c.l.b16 %v196
    %v1056 = vunpack.c.l.b16 %v197
    %v1057 = vunpack.c.l.b16 %v198
    %v1058 = vunpack.c.l.b16 %v199
    %v1059 = vunpack.c.l.b16 %v200
    %v1060 = vunpack.c.l.b16 %v201
    %v1061 = vunpack.c.l.b16 %v202
    %v1062 = vunpack.c.l.b16 %v203
    %v1063 = vunpack.c.l.b16 %v204
    %v1064 = vunpack.c.l.b16 %v205
    %v1065 = vunpack.c.l.b16 %v206
    %v1066 = vunpack.c.l.b16 %v207
    %v1067 = vunpack.c.l.b16 %v208
    %v1068 = vunpack.c.l.b16 %v209
    %v1069 = vunpack.c.l.b16 %v210
    %v1070 = vunpack.c.l.b16 %v211
    %v1071 = vunpack.c.l.b16 %v212
    %v1072 = vunpack.c.l.b16 %v213
    %v1073 = vunpack.c.l.b16 %v214
    %v1074 = vunpack.c.l.b16 %v215
    %v1075 = vunpack.c.l.b16 %v216
    %v1076 = vunpack.c.l.b16 %v217
    %v1077 = vunpack.c.l.b16 %v218
    %v1078 = vunpack.c.l.b16 %v219
    %v1079 = vunpack.c.l.b16 %v220
    %v1080 = vunpack.c.l.b16 %v221
    %v1081 = vunpack.c.l.b16 %v222
    %v1082 = vunpack.c.l.b16 %v223
    %v1083 = vunpack.c.l.b16 %v224
    %v1084 = vunpack.c.l.b16 %v225
    %v1085 = vunpack.c.l.b16 %v226
    %v1086 = vunpack.c.l.b16 %v227
    %v1087 = vunpack.c.l.b16 %v228
    %v1088 = vunpack.c.l.b16 %v229
    %v1089 = vunpack.c.l.b16 %v230
    %v1090 = vunpack.c.l.b16 %v231
    %v1091 = vunpack.c.l.b16 %v232
    %v1092 = vunpack.c.l.b16 %v233
    %v1093 = vunpack.c.l.b16 %v234
    %v1094 = vunpack.c.l.b16 %v235
    %v1095 = vunpack.c.l.b16 %v236
    %v1096 = vunpack.c.l.b16 %v237
    %v1097 = vunpack.c.l.b16 %v238
    %v1098 = vunpack.c.l.b16 %v239
    %v1099 = vunpack.c.l.b16 %v240
    %v1100 = vunpack.c.l.b16 %v241
    %v1101 = vunpack.c.l.b16 %v242
    %v1102 = vunpack.c.l.b16 %v243
    %v1103 = vunpack.c.l.b16 %v244
    %v1104 = vunpack.c.l.b16 %v245
    %v1105 = vunpack.c.l.b16 %v246
    %v1106 = vunpack.c.l.b16 %v247
    %v1107 = vunpack.c.l.b16 %v248
    %v1108 = vunpack.c.l.b16 %v249
    %v1109 = vunpack.c.l.b16 %v250
    %v1110 = vunpack.c.l.b16 %v251
    %v1111 = vunpack.c.l.b16 %v252
    %v1112 = vunpack.c.l.b16 %v253
    %v1113 = vunpack.c.l.b16 %v254
    %v1114 = vunpack.c.l.b16 %v255
    %v1115 = vunpack.c.l.b16 %v256
    %v1116 = vunpack.c.l.b16 %v257
    %v1117 = vunpack.c.l.b16 %v258
    %v1118 = vunpack.c.l.b16 %v259
    %v1119 = vunpack.c.l.b16 %v260
    %v1120 = vunpack.c.l.b16 %v261
    %v1121 = vunpack.c.l.b16 %v262
    %v1122 = vunpack.c.l.b16 %v263
    %v1123 = vunpack.c.l.b16 %v264
    %v1124 = vunpack.c.l.b16 %v265
    %v1125 = vunpack.c.l.b16 %v266
    %v1126 = vunpack.c.l.b16 %v267
    %v1127 = vunpack.c.l.b16 %v268
    %v1128 = vunpack.c.l.b16 %v269
    %v1129 = vunpack.c.l.b16 %v270
    %v1130 = vunpack.c.l.b16 %v271
    %v1131 = vunpack.c.l.b16 %v272
    %v1132 = vunpack.c.l.b16 %v273
    %v1133 = vunpack.c.l.b16 %v274
    %v1134 = vunpack.c.l.b16 %v275
    %v1135 = vunpack.c.l.b16 %v276
    %v1136 = vunpack.c.l.b16 %v277
    %v1137 = vunpack.c.l.b16 %v278
    %v1138 = vunpack.c.l.b16 %v279
    %v1139 = vunpack.c.l.b16 %v280
    %v1140 = vunpack.c.l.b16 %v281
    %v1141 = vunpack.c.l.b16 %v282
    %v1142 = vunpack.c.l.b16 %v283
    %v1143 = vunpack.c.l.b16 %v284
    %v1144 = vunpack.c.l.b16 %v285
    %v1145 = vunpack.c.l.b16 %v286
    %v1146 = vunpack.c.l.b16 %v287
    %v1147 = vunpack.c.l.b16 %v288
    %v1148 = vunpack.c.l.b16 %v289
    %v1149 = vunpack.c.l.b16 %v290
    %v1150 = vunpack.c.l.b16 %v291
    %v1151 = vunpack.c.l.b16 %v292
    %v1152 = vunpack.c.l.b16 %v293
    %v1153 = vunpack.c.l.b16 %v294
    %v1154 = vunpack.c.l.b16 %v295
    %v1155 = vunpack.c.l.b16 %v296
    %v1156 = vunpack.c.l.b16 %v297
    %v1157 = vunpack.c.l.b16 %v298
    %v1158 = vunpack.c.l.b16 %v299
    %v1159 = vunpack.c.l.b16 %v300
    %v1160 = vunpack.c.l.b16 %v301
    %v1161 = vunpack.c.l.b16 %v302
    %v1162 = vunpack.c.l.b16 %v303
    %v1163 = vunpack.c.l.b16 %v304
    %v1164 = vunpack.c.l.b16 %v305
    %v1165 = vunpack.c.l.b16 %v306
    %v1166 = vunpack.c.l.b16 %v307
    %v1167 = vunpack.c.l.b16 %v308
    %v1168 = vunpack.c.l.b16 %v309
    %v1169 = vunpack.c.l.b16 %v310
    %v1170 = vunpack.c.l.b16 %v311
    %v1171 = vunpack.c.l.b16 %v312
    %v1172 = vunpack.c.l.b16 %v313
    %v1173 = vunpack.c.l.b16 %v314
    %v1174 = vunpack.c.l.b16 %v315
    %v1175 = vunpack.c.l.b16 %v316
    %v1176 = vunpack.c.l.b16 %v317
    %v1177 = vunpack.c.l.b16 %v318
    %v1178 = vunpack.c.l.b16 %v319
    %v1179 = vunpack.c.l.b16 %v320
    %v1180 = vunpack.c.l.b16 %v321
    %v1181 = vunpack.c.l.b16 %v322
    %v1182 = vunpack.c.l.b16 %v323
    %v1183 = vunpack.c.l.b16 %v324
    %v1184 = vunpack.c.l.b16 %v325
    %v1185 = vunpack.c.l.b16 %v326
    %v1186 = vunpack.c.l.b16 %v327
    %v1187 = vunpack.c.l.b16 %v328
    %v1188 = vunpack.c.l.b16 %v329
    %v1189 = vunpack.c.l.b16 %v330
    %v1190 = vunpack.c.l.b16 %v331
    %v1191 = vunpack.c.l.b16 %v332
    %v1192 = vunpack.c.l.b16 %v333
    %v1193 = vunpack.c.l.b16 %v334
    %v1194 = vunpack.c.l.b16 %v335
    %v1195 = vunpack.c.l.b16 %v336
    %v1196 = vunpack.c.l.b16 %v337
    %v1197 = vunpack.c.l.b16 %v338
    %v1198 = vunpack.c.l.b16 %v339
    %v1199 = vunpack.c.l.b16 %v340
    %v1200 = vunpack.c.l.b16 %v341
    %v1201 = vunpack.c.l.b16 %v342
    %v1202 = vunpack.c.l.b16 %v343
    %v1203 = vunpack.c.l.b16 %v344
    %v1204 = vunpack.c.l.b16 %v345
    %v1205 = vunpack.c.l.b16 %v346
    %v1206 = vunpack.c.l.b16 %v347
    %v1207 = vunpack.c.l.b16 %v348
    %v1208 = vunpack.c.l.b16 %v349
    %v1209 = vunpack.c.l.b16 %v350
    %v1210 = vunpack.c.l.b16 %v351
    %v1211 = vunpack.c.l.b16 %v352
    %v1212 = vunpack.c.l.b16 %v353
    %v1213 = vunpack.c.l.b16 %v354
    %v1214 = vunpack.c.l.b16 %v355
    %v1215 = vunpack.c.l.b16 %v356
    %v1216 = vunpack.c.l.b16 %v357
    %v1217 = vunpack.c.l.b16 %v358
    %v1218 = vunpack.c.l.b16 %v359
    %v1219 = vunpack.c.l.b16 %v360
    %v1220 = vunpack.c.l.b16 %v361
    %v1221 = vunpack.c.l.b16 %v362
    %v1222 = vunpack.c.l.b16 %v363
    %v1223 = vunpack.c.l.b16 %v364
    %v1224 = vunpack.c.l.b16 %v365
    %v1225 = vunpack.c.l.b16 %v366
    %v1226 = vunpack.c.l.b16 %v367
    %v1227 = vunpack.c.l.b16 %v368
    %v1228 = vunpack.c.l.b16 %v369
    %v1229 = vunpack.c.l.b16 %v370
    %v1230 = vunpack.c.l.b16 %v371
    %v1231 = vunpack.c.l.b16 %v372
    %v1232 = vunpack.c.l.b16 %v373
    %v1233 = vunpack.c.l.b16 %v374
    %v1234 = vunpack.c.l.b16 %v375
    %v1235 = vunpack.c.l.b16 %v376
    %v1236 = vunpack.c.l.b16 %v377
    %v1237 = vunpack.c.l.b16 %v378
    %v1238 = vunpack.c.l.b16 %v379
    %v1239 = vunpack.c.l.b16 %v380
    %v1240 = vunpack.c.l.b16 %v381
    %v1241 = vunpack.c.l.b16 %v382
    %v1242 = vunpack.c.l.b16 %v383
    %v1243 = vunpack.c.l.b16 %v384
    %v1244 = vunpack.c.l.b16 %v385
    %v1245 = vunpack.c.l.b16 %v386
    %v1246 = vunpack.c.l.b16 %v387
    %v1247 = vunpack.c.l.b16 %v388
    %v1248 = vunpack.c.l.b16 %v389
    %v1249 = vunpack.c.l.b16 %v390
    %v1250 = vunpack.c.l.b16 %v391
    %v1251 = vunpack.c.l.b16 %v392
    %v1252 = vunpack.c.l.b16 %v393
    %v1253 = vunpack.c.l.b16 %v394
    %v1254 = vunpack.c.l.b16 %v395
    %v1255 = vunpack.c.l.b16 %v396
    %v1256 = vunpack.c.l.b16 %v397
    %v1257 = vunpack.c.l.b16 %v398
    %v1258 = vunpack.c.l.b16 %v399
    %v1259 = vunpack.c.l.b16 %v400
    %v1260 = vunpack.c.l.b16 %v401
    %v1261 = vunpack.c.l.b16 %v402
    %v1262 = vunpack.c.l.b16 %v403
    %v1263 = vunpack.c.l.b16 %v404
    %v1264 = vunpack.c.l.b16 %v405
    %v1265 = vunpack.c.l.b16 %v406
    %v1266 = vunpack.c.l.b16 %v407
    %v1267 = vunpack.c.l.b16 %v408
    %v1268 = vunpack.c.l.b16 %v409
    %v1269 = vunpack.c.l.b16 %v410
    %v1270 = vunpack.c.l.b16 %v411
    %v1271 = vunpack.c.l.b16 %v412
    %v1272 = vunpack.c.l.b16 %v413
    %v1273 = vunpack.c.l.b16 %v414
    %v1274 = vunpack.c.l.b16 %v415
    %v1275 = vunpack.c.l.b16 %v416
    %v1276 = vunpack.c.l.b16 %v417
    %v1277 = vunpack.c.l.b16 %v418
    %v1278 = vunpack.c.l.b16 %v419
    %v1279 = vunpack.c.l.b16 %v420
    %v1280 = vunpack.c.l.b16 %v421
    %v1281 = vunpack.c.l.b16 %v422
    %v1282 = vunpack.c.l.b16 %v423
    %v1283 = vunpack.c.l.b16 %v424
    %v1284 = vunpack.c.l.b16 %v425
    %v1285 = vunpack.c.l.b16 %v426
    %v1286 = vunpack.c.l.b16 %v427
    %v1287 = vunpack.c.l.b16 %v428
    %v1288 = vunpack.c.l.b16 %v429
    %v1289 = vunpack.c.l.b16 %v430
    %v1290 = vunpack.c.l.b16 %v431
    %v1291 = vunpack.c.l.b16 %v432
    %v1292 = vunpack.c.l.b16 %v433
    %v1293 = vunpack.c.l.b16 %v434
    %v1294 = vunpack.c.l.b16 %v435
    %v1295 = vunpack.c.l.b16 %v436
    %v1296 = vunpack.c.l.b16 %v437
    %v1297 = vunpack.c.l.b16 %v438
    %v1298 = vunpack.c.l.b16 %v439
    %v1299 = vunpack.c.l.b16 %v440
    %v1300 = vpack.c.b16 %v917, %v916
    %v1301 = vpack.c.b16 %v919, %v918
    %v1302 = vpack.c.b16 %v921, %v920
    %v1303 = vpack.c.b16 %v923, %v922
    %v1304 = vpack.c.b16 %v925, %v924
    %v1305 = vpack.c.b16 %v927, %v926
    %v1306 = vpack.c.b16 %v929, %v928
    %v1307 = vpack.c.b16 %v931, %v930
    %v1308 = vpack.c.b16 %v933, %v932
    %v1309 = vpack.c.b16 %v935, %v934
    %v1310 = vpack.c.b16 %v937, %v936
    %v1311 = vpack.c.b16 %v939, %v938
    %v1312 = vpack.c.b16 %v941, %v940
    %v1313 = vpack.c.b16 %v943, %v942
    %v1314 = vpack.c.b16 %v945, %v944
    %v1315 = vpack.c.b16 %v947, %v946
    %v1316 = vpack.c.b16 %v949, %v948
    %v1317 = vpack.c.b16 %v951, %v950
    %v1318 = vpack.c.b16 %v953, %v952
    %v1319 = vpack.c.b16 %v955, %v954
    %v1320 = vpack.c.b16 %v957, %v956
    %v1321 = vpack.c.b16 %v959, %v958
    %v1322 = vpack.c.b16 %v961, %v960
    %v1323 = vpack.c.b16 %v963, %v962
    %v1324 = vpack.c.b16 %v965, %v964
    %v1325 = vpack.c.b16 %v967, %v966
    %v1326 = vpack.c.b16 %v969, %v968
    %v1327 = vpack.c.b16 %v971, %v970
    %v1328 = vpack.c.b16 %v973, %v972
    %v1329 = vpack.c.b16 %v975, %v974
    %v1330 = vpack.c.b16 %v977, %v976
    %v1331 = vpack.c.b16 %v979, %v978
    %v1332 = vpack.c.b16 %v981, %v980
    %v1333 = vpack.c.b16 %v983, %v982
    %v1334 = vpack.c.b16 %v985, %v984
    %v1335 = vpack.c.b16 %v987, %v986
    %v1336 = vpack.c.b16 %v989, %v988
    %v1337 = vpack.c.b16 %v991, %v990
    %v1338 = vpack.c.b16 %v993, %v992
    %v1339 = vpack.c.b16 %v995, %v994
    %v1340 = vpack.c.b16 %v997, %v996
    %v1341 = vpack.c.b16 %v999, %v998
    %v1342 = vpack.c.b16 %v1001, %v1000
    %v1343 = vpack.c.b16 %v1003, %v1002
    %v1344 = vpack.c.b16 %v1005, %v1004
    %v1345 = vpack.c.b16 %v1007, %v1006
    %v1346 = vpack.c.b16 %v1009, %v1008
    %v1347 = vpack.c.b16 %v1011, %v1010
    %v1348 = vpack.c.b16 %v1013, %v1012
    %v1349 = vpack.c.b16 %v1015, %v1014
    %v1350 = vpack.c.b16 %v1017, %v1016
    %v1351 = vpack.c.b16 %v1019, %v1018
    %v1352 = vpack.c.b16 %v1021, %v1020
    %v1353 = vpack.c.b16 %v1023, %v1022
    %v1354 = vpack.c.b16 %v1025, %v1024
    %v1355 = vpack.c.b16 %v1027, %v1026
    %v1356 = vpack.c.b16 %v1029, %v1028
    %v1357 = vpack.c.b16 %v1031, %v1030
    %v1358 = vpack.c.b16 %v1033, %v1032
    %v1359 = vpack.c.b16 %v1035, %v1034
    %v1360 = vpack.c.b16 %v1037, %v1036
    %v1361 = vpack.c.b16 %v1039, %v1038
    %v1362 = vpack.c.b16 %v1041, %v1040
    %v1363 = vpack.c.b16 %v1043, %v1042
    %v1364 = vpack.c.b16 %v1045, %v1044
    %v1365 = vpack.c.b16 %v1047, %v1046
    %v1366 = vpack.c.b16 %v1049, %v1048
    %v1367 = vpack.c.b16 %v1051, %v1050
    %v1368 = vpack.c.b16 %v1053, %v1052
    %v1369 = vpack.c.b16 %v1055, %v1054
    %v1370 = vpack.c.b16 %v1057, %v1056
    %v1371 = vpack.c.b16 %v1059, %v1058
    %v1372 = vpack.c.b16 %v1061, %v1060
    %v1373 = vpack.c.b16 %v1063, %v1062
    %v1374 = vpack.c.b16 %v1065, %v1064
    %v1375 = vpack.c.b16 %v1067, %v1066
    %v1376 = vpack.c.b16 %v1069, %v1068
    %v1377 = vpack.c.b16 %v1071, %v1070
    %v1378 = vpack.c.b16 %v1073, %v1072
    %v1379 = vpack.c.b16 %v1075, %v1074
    %v1380 = vpack.c.b16 %v1077, %v1076
    %v1381 = vpack.c.b16 %v1079, %v1078
    %v1382 = vpack.c.b16 %v1081, %v1080
    %v1383 = vpack.c.b16 %v1083, %v1082
    %v1384 = vpack.c.b16 %v1085, %v1084
    %v1385 = vpack.c.b16 %v1087, %v1086
    %v1386 = vpack.c.b16 %v1089, %v1088
    %v1387 = vpack.c.b16 %v1091, %v1090
    %v1388 = vpack.c.b16 %v1093, %v1092
    %v1389 = vpack.c.b16 %v1095, %v1094
    %v1390 = vpack.c.b16 %v1097, %v1096
    %v1391 = vpack.c.b16 %v1099, %v1098
    %v1392 = vpack.c.b16 %v1101, %v1100
    %v1393 = vpack.c.b16 %v1103, %v1102
    %v1394 = vpack.c.b16 %v1105, %v1104
    %v1395 = vpack.c.b16 %v1107, %v1106
    %v1396 = vpack.c.b16 %v1109, %v1108
    %v1397 = vpack.c.b16 %v1111, %v1110
    %v1398 = vpack.c.b16 %v1113, %v1112
    %v1399 = vpack.c.b16 %v1115, %v1114
    %v1400 = vpack.c.b16 %v1117, %v1116
    %v1401 = vpack.c.b16 %v1119, %v1118
    %v1402 = vpack.c.b16 %v1121, %v1120
    %v1403 = vpack.c.b16 %v1123, %v1122
    %v1404 = vpack.c.b16 %v1125, %v1124
    %v1405 = vpack.c.b16 %v1127, %v1126
    %v1406 = vpack.c.b16 %v1129, %v1128
    %v1407 = vpack.c.b16 %v1131, %v1130
    %v1408 = vpack.c.b16 %v1133, %v1132
    %v1409 = vpack.c.b16 %v1135, %v1134
    %v1410 = vpack.c.b16 %v1137, %v1136
    %v1411 = vpack.c.b16 %v1139, %v1138
    %v1412 = vpack.c.b16 %v1141, %v1140
    %v1413 = vpack.c.b16 %v1143, %v1142
    %v1414 = vpack.c.b16 %v1145, %v1144
    %v1415 = vpack.c.b16 %v1147, %v1146
    %v1416 = vpack.c.b16 %v1149, %v1148
    %v1417 = vpack.c.b16 %v1151, %v1150
    %v1418 = vpack.c.b16 %v1153, %v1152
    %v1419 = vpack.c.b16 %v1155, %v1154
    %v1420 = vpack.c.b16 %v1157, %v1156
    %v1421 = vpack.c.b16 %v1159, %v1158
    %v1422 = vpack.c.b16 %v1161, %v1160
    %v1423 = vpack.c.b16 %v1163, %v1162
    %v1424 = vpack.c.b16 %v1165, %v1164
    %v1425 = vpack.c.b16 %v1167, %v1166
    %v1426 = vpack.c.b16 %v1169, %v1168
    %v1427 = vpack.c.b16 %v1171, %v1170
    %v1428 = vpack.c.b16 %v1173, %v1172
    %v1429 = vpack.c.b16 %v1175, %v1174
    %v1430 = vpack.c.b16 %v1177, %v1176
    %v1431 = vpack.c.b16 %v1179, %v1178
    %v1432 = vpack.c.b16 %v1181, %v1180
    %v1433 = vpack.c.b16 %v1183, %v1182
    %v1434 = vpack.c.b16 %v1185, %v1184
    %v1435 = vpack.c.b16 %v1187, %v1186
    %v1436 = vpack.c.b16 %v1189, %v1188
    %v1437 = vpack.c.b16 %v1191, %v1190
    %v1438 = vpack.c.b16 %v1193, %v1192
    %v1439 = vpack.c.b16 %v1195, %v1194
    %v1440 = vpack.c.b16 %v1197, %v1196
    %v1441 = vpack.c.b16 %v1199, %v1198
    %v1442 = vpack.c.b16 %v1201, %v1200
    %v1443 = vpack.c.b16 %v1203, %v1202
    %v1444 = vpack.c.b16 %v1205, %v1204
    %v1445 = vpack.c.b16 %v1207, %v1206
    %v1446 = vpack.c.b16 %v1209, %v1208
    %v1447 = vpack.c.b16 %v1211, %v1210
    %v1448 = vpack.c.b16 %v1213, %v1212
    %v1449 = vpack.c.b16 %v1215, %v1214
    %v1450 = vpack.c.b16 %v1217, %v1216
    %v1451 = vpack.c.b16 %v1219, %v1218
    %v1452 = vpack.c.b16 %v1221, %v1220
    %v1453 = vpack.c.b16 %v1223, %v1222
    %v1454 = vpack.c.b16 %v1225, %v1224
    %v1455 = vpack.c.b16 %v1227, %v1226
    %v1456 = vpack.c.b16 %v1229, %v1228
    %v1457 = vpack.c.b16 %v1231, %v1230
    %v1458 = vpack.c.b16 %v1233, %v1232
    %v1459 = vpack.c.b16 %v1235, %v1234
    %v1460 = vpack.c.b16 %v1237, %v1236
    %v1461 = vpack.c.b16 %v1239, %v1238
    %v1462 = vpack.c.b16 %v1241, %v1240
    %v1463 = vpack.c.b16 %v1243, %v1242
    %v1464 = vpack.c.b16 %v1245, %v1244
    %v1465 = vpack.c.b16 %v1247, %v1246
    %v1466 = vpack.c.b16 %v1249, %v1248
    %v1467 = vpack.c.b16 %v1251, %v1250
    %v1468 = vpack.c.b16 %v1253, %v1252
    %v1469 = vpack.c.b16 %v1255, %v1254
    %v1470 = vpack.c.b16 %v1257, %v1256
    %v1471 = vpack.c.b16 %v1259, %v1258
    %v1472 = vpack.c.b16 %v1261, %v1260
    %v1473 = vpack.c.b16 %v1263, %v1262
    %v1474 = vpack.c.b16 %v1265, %v1264
    %v1475 = vpack.c.b16 %v1267, %v1266
    %v1476 = vpack.c.b16 %v1269, %v1268
    %v1477 = vpack.c.b16 %v1271, %v1270
    %v1478 = vpack.c.b16 %v1273, %v1272
    %v1479 = vpack.c.b16 %v1275, %v1274
    %v1480 = vpack.c.b16 %v1277, %v1276
    %v1481 = vpack.c.b16 %v1279, %v1278
    %v1482 = vpack.c.b16 %v1281, %v1280
    %v1483 = vpack.c.b16 %v1283, %v1282
    %v1484 = vpack.c.b16 %v1285, %v1284
    %v1485 = vpack.c.b16 %v1287, %v1286
    %v1486 = vpack.c.b16 %v1289, %v1288
    %v1487 = vpack.c.b16 %v1291, %v1290
    %v1488 = vpack.c.b16 %v1293, %v1292
    %v1489 = vpack.c.b16 %v1295, %v1294
    %v1490 = vpack.c.b16 %v1297, %v1296
    %v1491 = vpack.c.b16 %v1299, %v1298
    %1684 = vmatprep.subr.bf16.mxu0 0
    %1685 = vmatpush1.bf16.msra.mxu0 %v1307
    %1686 = vmatprep.subr.bf16.mxu0 0
    %1687 = vmatpush1.bf16.msra.mxu0 %v1306
    %1688 = vmatprep.subr.bf16.mxu0 0
    %1689 = vmatpush1.bf16.msra.mxu0 %v1305
    %1690 = vmatprep.subr.bf16.mxu0 0
    %1691 = vmatpush1.bf16.msra.mxu0 %v1304
    %1692 = vmatprep.subr.bf16.mxu0 0
    %1693 = vmatpush1.bf16.msra.mxu0 %v1303
    %1694 = vmatprep.subr.bf16.mxu0 0
    %1695 = vmatpush1.bf16.msra.mxu0 %v1302
    %1696 = vmatprep.subr.bf16.mxu0 0
    %1697 = vmatpush1.bf16.msra.mxu0 %v1301
    %1698 = vmatprep.subr.bf16.mxu0 0
    %1699 = vmatpush1.bf16.msra.mxu0 %v1300
    %1700 = vmatprep.subr.bf16.mxu0 0
    %1701 = vmatpush2.bf16.msra.mxu0 %v1315
    %1702 = vmatprep.subr.bf16.mxu0 0
    %1703 = vmatpush2.bf16.msra.mxu0 %v1314
    %1704 = vmatprep.subr.bf16.mxu0 0
    %1705 = vmatpush2.bf16.msra.mxu0 %v1313
    %1706 = vmatprep.subr.bf16.mxu0 0
    %1707 = vmatpush2.bf16.msra.mxu0 %v1312
    %1708 = vmatprep.subr.bf16.mxu0 0
    %1709 = vmatpush2.bf16.msra.mxu0 %v1311
    %1710 = vmatprep.subr.bf16.mxu0 0
    %1711 = vmatpush2.bf16.msra.mxu0 %v1310
    %1712 = vmatprep.subr.bf16.mxu0 0
    %1713 = vmatpush2.bf16.msra.mxu0 %v1309
    %1714 = vmatprep.subr.bf16.mxu0 0
    %1715 = vmatpush2.bf16.msra.mxu0 %v1308
    %1716 = vmatprep.mubr.bf16.mxu0 %v485
    %1717 = vmatmul.mubr.bf16.gmra.mxu0 %v484
    %v1718 = vpop.f32.mrf.mxu0
    %v1719 = vadd.f32 %v446, %v1718
    %v1720 = vpop.f32.mrf.mxu0
    %v1721 = vpop.f32.mrf.mxu0
    %v1722 = vpop.f32.mrf.mxu0
    %1723 = vdwg.mxu0
    %1724 = vmatprep.subr.bf16.mxu0 0
    %1725 = vmatpush1.bf16.msra.mxu0 %v1323
    %1726 = vmatprep.subr.bf16.mxu0 0
    %1727 = vmatpush1.bf16.msra.mxu0 %v1322
    %1728 = vmatprep.subr.bf16.mxu0 0
    %1729 = vmatpush1.bf16.msra.mxu0 %v1321
    %1730 = vmatprep.subr.bf16.mxu0 0
    %1731 = vmatpush1.bf16.msra.mxu0 %v1320
    %1732 = vmatprep.subr.bf16.mxu0 0
    %1733 = vmatpush1.bf16.msra.mxu0 %v1319
    %1734 = vmatprep.subr.bf16.mxu0 0
    %1735 = vmatpush1.bf16.msra.mxu0 %v1318
    %1736 = vmatprep.subr.bf16.mxu0 0
    %1737 = vmatpush1.bf16.msra.mxu0 %v1317
    %1738 = vmatprep.subr.bf16.mxu0 0
    %1739 = vmatpush1.bf16.msra.mxu0 %v1316
    %1740 = vmatprep.subr.bf16.mxu0 0
    %1741 = vmatpush2.bf16.msra.mxu0 %v1331
    %1742 = vmatprep.subr.bf16.mxu0 0
    %1743 = vmatpush2.bf16.msra.mxu0 %v1330
    %1744 = vmatprep.subr.bf16.mxu0 0
    %1745 = vmatpush2.bf16.msra.mxu0 %v1329
    %1746 = vmatprep.subr.bf16.mxu0 0
    %1747 = vmatpush2.bf16.msra.mxu0 %v1328
    %1748 = vmatprep.subr.bf16.mxu0 0
    %1749 = vmatpush2.bf16.msra.mxu0 %v1327
    %1750 = vmatprep.subr.bf16.mxu0 0
    %1751 = vmatpush2.bf16.msra.mxu0 %v1326
    %1752 = vmatprep.subr.bf16.mxu0 0
    %1753 = vmatpush2.bf16.msra.mxu0 %v1325
    %1754 = vmatprep.subr.bf16.mxu0 0
    %1755 = vmatpush2.bf16.msra.mxu0 %v1324
    %1756 = vmatprep.mubr.bf16.mxu0 %v487
    %1757 = vmatmul.mubr.bf16.gmra.mxu0 %v486
    %v1758 = vpop.f32.mrf.mxu0
    %v1759 = vadd.f32 %v1719, %v1758
    %v1760 = vpop.f32.mrf.mxu0
    %v1761 = vpop.f32.mrf.mxu0
    %v1762 = vpop.f32.mrf.mxu0
    %1763 = vdwg.mxu0
    %1764 = vmatprep.subr.bf16.mxu0 0
    %1765 = vmatpush1.bf16.msra.mxu0 %v1339
    %1766 = vmatprep.subr.bf16.mxu0 0
    %1767 = vmatpush1.bf16.msra.mxu0 %v1338
    %1768 = vmatprep.subr.bf16.mxu0 0
    %1769 = vmatpush1.bf16.msra.mxu0 %v1337
    %1770 = vmatprep.subr.bf16.mxu0 0
    %1771 = vmatpush1.bf16.msra.mxu0 %v1336
    %1772 = vmatprep.subr.bf16.mxu0 0
    %1773 = vmatpush1.bf16.msra.mxu0 %v1335
    %1774 = vmatprep.subr.bf16.mxu0 0
    %1775 = vmatpush1.bf16.msra.mxu0 %v1334
    %1776 = vmatprep.subr.bf16.mxu0 0
    %1777 = vmatpush1.bf16.msra.mxu0 %v1333
    %1778 = vmatprep.subr.bf16.mxu0 0
    %1779 = vmatpush1.bf16.msra.mxu0 %v1332
    %1780 = vmatprep.subr.bf16.mxu0 0
    %1781 = vmatpush2.bf16.msra.mxu0 %v1347
    %1782 = vmatprep.subr.bf16.mxu0 0
    %1783 = vmatpush2.bf16.msra.mxu0 %v1346
    %1784 = vmatprep.subr.bf16.mxu0 0
    %1785 = vmatpush2.bf16.msra.mxu0 %v1345
    %1786 = vmatprep.subr.bf16.mxu0 0
    %1787 = vmatpush2.bf16.msra.mxu0 %v1344
    %1788 = vmatprep.subr.bf16.mxu0 0
    %1789 = vmatpush2.bf16.msra.mxu0 %v1343
    %1790 = vmatprep.subr.bf16.mxu0 0
    %1791 = vmatpush2.bf16.msra.mxu0 %v1342
    %1792 = vmatprep.subr.bf16.mxu0 0
    %1793 = vmatpush2.bf16.msra.mxu0 %v1341
    %1794 = vmatprep.subr.bf16.mxu0 0
    %1795 = vmatpush2.bf16.msra.mxu0 %v1340
    %1796 = vmatprep.mubr.bf16.mxu0 %v489
    %1797 = vmatmul.mubr.bf16.gmra.mxu0 %v488
    %v1798 = vpop.f32.mrf.mxu0
    %v1799 = vadd.f32 %v1759, %v1798
    %v1800 = vpop.f32.mrf.mxu0
    %v1801 = vpop.f32.mrf.mxu0
    %v1802 = vpop.f32.mrf.mxu0
    %1803 = vdwg.mxu0
    %1804 = vmatprep.subr.bf16.mxu0 0
    %1805 = vmatpush1.bf16.msra.mxu0 %v1355
    %1806 = vmatprep.subr.bf16.mxu0 0
    %1807 = vmatpush1.bf16.msra.mxu0 %v1354
    %1808 = vmatprep.subr.bf16.mxu0 0
    %1809 = vmatpush1.bf16.msra.mxu0 %v1353
    %1810 = vmatprep.subr.bf16.mxu0 0
    %1811 = vmatpush1.bf16.msra.mxu0 %v1352
    %1812 = vmatprep.subr.bf16.mxu0 0
    %1813 = vmatpush1.bf16.msra.mxu0 %v1351
    %1814 = vmatprep.subr.bf16.mxu0 0
    %1815 = vmatpush1.bf16.msra.mxu0 %v1350
    %1816 = vmatprep.subr.bf16.mxu0 0
    %1817 = vmatpush1.bf16.msra.mxu0 %v1349
    %1818 = vmatprep.subr.bf16.mxu0 0
    %1819 = vmatpush1.bf16.msra.mxu0 %v1348
    %1820 = vmatprep.subr.bf16.mxu0 0
    %1821 = vmatpush2.bf16.msra.mxu0 %v1363
    %1822 = vmatprep.subr.bf16.mxu0 0
    %1823 = vmatpush2.bf16.msra.mxu0 %v1362
    %1824 = vmatprep.subr.bf16.mxu0 0
    %1825 = vmatpush2.bf16.msra.mxu0 %v1361
    %1826 = vmatprep.subr.bf16.mxu0 0
    %1827 = vmatpush2.bf16.msra.mxu0 %v1360
    %1828 = vmatprep.subr.bf16.mxu0 0
    %1829 = vmatpush2.bf16.msra.mxu0 %v1359
    %1830 = vmatprep.subr.bf16.mxu0 0
    %1831 = vmatpush2.bf16.msra.mxu0 %v1358
    %1832 = vmatprep.subr.bf16.mxu0 0
    %1833 = vmatpush2.bf16.msra.mxu0 %v1357
    %1834 = vmatprep.subr.bf16.mxu0 0
    %1835 = vmatpush2.bf16.msra.mxu0 %v1356
    %1836 = vmatprep.mubr.bf16.mxu0 %v491
    %1837 = vmatmul.mubr.bf16.gmra.mxu0 %v490
    %v1838 = vpop.f32.mrf.mxu0
    %v1839 = vadd.f32 %v1799, %v1838
    %v1840 = vpop.f32.mrf.mxu0
    %v1841 = vpop.f32.mrf.mxu0
    %v1842 = vpop.f32.mrf.mxu0
    %1843 = vdwg.mxu0
    %1844 = vmatprep.subr.bf16.mxu0 0
    %1845 = vmatpush1.bf16.msra.mxu0 %v1371
    %1846 = vmatprep.subr.bf16.mxu0 0
    %1847 = vmatpush1.bf16.msra.mxu0 %v1370
    %1848 = vmatprep.subr.bf16.mxu0 0
    %1849 = vmatpush1.bf16.msra.mxu0 %v1369
    %1850 = vmatprep.subr.bf16.mxu0 0
    %1851 = vmatpush1.bf16.msra.mxu0 %v1368
    %1852 = vmatprep.subr.bf16.mxu0 0
    %1853 = vmatpush1.bf16.msra.mxu0 %v1367
    %1854 = vmatprep.subr.bf16.mxu0 0
    %1855 = vmatpush1.bf16.msra.mxu0 %v1366
    %1856 = vmatprep.subr.bf16.mxu0 0
    %1857 = vmatpush1.bf16.msra.mxu0 %v1365
    %1858 = vmatprep.subr.bf16.mxu0 0
    %1859 = vmatpush1.bf16.msra.mxu0 %v1364
    %1860 = vmatprep.subr.bf16.mxu0 0
    %1861 = vmatpush2.bf16.msra.mxu0 %v1379
    %1862 = vmatprep.subr.bf16.mxu0 0
    %1863 = vmatpush2.bf16.msra.mxu0 %v1378
    %1864 = vmatprep.subr.bf16.mxu0 0
    %1865 = vmatpush2.bf16.msra.mxu0 %v1377
    %1866 = vmatprep.subr.bf16.mxu0 0
    %1867 = vmatpush2.bf16.msra.mxu0 %v1376
    %1868 = vmatprep.subr.bf16.mxu0 0
    %1869 = vmatpush2.bf16.msra.mxu0 %v1375
    %1870 = vmatprep.subr.bf16.mxu0 0
    %1871 = vmatpush2.bf16.msra.mxu0 %v1374
    %1872 = vmatprep.subr.bf16.mxu0 0
    %1873 = vmatpush2.bf16.msra.mxu0 %v1373
    %1874 = vmatprep.subr.bf16.mxu0 0
    %1875 = vmatpush2.bf16.msra.mxu0 %v1372
    %1876 = vmatprep.mubr.bf16.mxu0 %v493
    %1877 = vmatmul.mubr.bf16.gmra.mxu0 %v492
    %v1878 = vpop.f32.mrf.mxu0
    %v1879 = vadd.f32 %v1839, %v1878
    %v1880 = vpop.f32.mrf.mxu0
    %v1881 = vpop.f32.mrf.mxu0
    %v1882 = vpop.f32.mrf.mxu0
    %1883 = vdwg.mxu0
    %1884 = vmatprep.subr.bf16.mxu0 0
    %1885 = vmatpush1.bf16.msra.mxu0 %v1387
    %1886 = vmatprep.subr.bf16.mxu0 0
    %1887 = vmatpush1.bf16.msra.mxu0 %v1386
    %1888 = vmatprep.subr.bf16.mxu0 0
    %1889 = vmatpush1.bf16.msra.mxu0 %v1385
    %1890 = vmatprep.subr.bf16.mxu0 0
    %1891 = vmatpush1.bf16.msra.mxu0 %v1384
    %1892 = vmatprep.subr.bf16.mxu0 0
    %1893 = vmatpush1.bf16.msra.mxu0 %v1383
    %1894 = vmatprep.subr.bf16.mxu0 0
    %1895 = vmatpush1.bf16.msra.mxu0 %v1382
    %1896 = vmatprep.subr.bf16.mxu0 0
    %1897 = vmatpush1.bf16.msra.mxu0 %v1381
    %1898 = vmatprep.subr.bf16.mxu0 0
    %1899 = vmatpush1.bf16.msra.mxu0 %v1380
    %1900 = vmatprep.subr.bf16.mxu0 0
    %1901 = vmatpush2.bf16.msra.mxu0 %v1395
    %1902 = vmatprep.subr.bf16.mxu0 0
    %1903 = vmatpush2.bf16.msra.mxu0 %v1394
    %1904 = vmatprep.subr.bf16.mxu0 0
    %1905 = vmatpush2.bf16.msra.mxu0 %v1393
    %1906 = vmatprep.subr.bf16.mxu0 0
    %1907 = vmatpush2.bf16.msra.mxu0 %v1392
    %1908 = vmatprep.subr.bf16.mxu0 0
    %1909 = vmatpush2.bf16.msra.mxu0 %v1391
    %1910 = vmatprep.subr.bf16.mxu0 0
    %1911 = vmatpush2.bf16.msra.mxu0 %v1390
    %1912 = vmatprep.subr.bf16.mxu0 0
    %1913 = vmatpush2.bf16.msra.mxu0 %v1389
    %1914 = vmatprep.subr.bf16.mxu0 0
    %1915 = vmatpush2.bf16.msra.mxu0 %v1388
    %1916 = vmatprep.mubr.bf16.mxu0 %v495
    %1917 = vmatmul.mubr.bf16.gmra.mxu0 %v494
    %v1918 = vpop.f32.mrf.mxu0
    %v1919 = vadd.f32 %v1879, %v1918
    %v1920 = vpop.f32.mrf.mxu0
    %v1921 = vpop.f32.mrf.mxu0
    %v1922 = vpop.f32.mrf.mxu0
    %1923 = vdwg.mxu0
    %1924 = vmatprep.subr.bf16.mxu0 0
    %1925 = vmatpush1.bf16.msra.mxu0 %v1403
    %1926 = vmatprep.subr.bf16.mxu0 0
    %1927 = vmatpush1.bf16.msra.mxu0 %v1402
    %1928 = vmatprep.subr.bf16.mxu0 0
    %1929 = vmatpush1.bf16.msra.mxu0 %v1401
    %1930 = vmatprep.subr.bf16.mxu0 0
    %1931 = vmatpush1.bf16.msra.mxu0 %v1400
    %1932 = vmatprep.subr.bf16.mxu0 0
    %1933 = vmatpush1.bf16.msra.mxu0 %v1399
    %1934 = vmatprep.subr.bf16.mxu0 0
    %1935 = vmatpush1.bf16.msra.mxu0 %v1398
    %1936 = vmatprep.subr.bf16.mxu0 0
    %1937 = vmatpush1.bf16.msra.mxu0 %v1397
    %1938 = vmatprep.subr.bf16.mxu0 0
    %1939 = vmatpush1.bf16.msra.mxu0 %v1396
    %1940 = vmatprep.subr.bf16.mxu0 0
    %1941 = vmatpush2.bf16.msra.mxu0 %v1411
    %1942 = vmatprep.subr.bf16.mxu0 0
    %1943 = vmatpush2.bf16.msra.mxu0 %v1410
    %1944 = vmatprep.subr.bf16.mxu0 0
    %1945 = vmatpush2.bf16.msra.mxu0 %v1409
    %1946 = vmatprep.subr.bf16.mxu0 0
    %1947 = vmatpush2.bf16.msra.mxu0 %v1408
    %1948 = vmatprep.subr.bf16.mxu0 0
    %1949 = vmatpush2.bf16.msra.mxu0 %v1407
    %1950 = vmatprep.subr.bf16.mxu0 0
    %1951 = vmatpush2.bf16.msra.mxu0 %v1406
    %1952 = vmatprep.subr.bf16.mxu0 0
    %1953 = vmatpush2.bf16.msra.mxu0 %v1405
    %1954 = vmatprep.subr.bf16.mxu0 0
    %1955 = vmatpush2.bf16.msra.mxu0 %v1404
    %1956 = vmatprep.mubr.bf16.mxu0 %v497
    %1957 = vmatmul.mubr.bf16.gmra.mxu0 %v496
    %v1958 = vpop.f32.mrf.mxu0
    %v1959 = vadd.f32 %v1919, %v1958
    %v1960 = vpop.f32.mrf.mxu0
    %v1961 = vpop.f32.mrf.mxu0
    %v1962 = vpop.f32.mrf.mxu0
    %1963 = vdwg.mxu0
    %1964 = vmatprep.subr.bf16.mxu0 0
    %1965 = vmatpush1.bf16.msra.mxu0 %v1419
    %1966 = vmatprep.subr.bf16.mxu0 0
    %1967 = vmatpush1.bf16.msra.mxu0 %v1418
    %1968 = vmatprep.subr.bf16.mxu0 0
    %1969 = vmatpush1.bf16.msra.mxu0 %v1417
    %1970 = vmatprep.subr.bf16.mxu0 0
    %1971 = vmatpush1.bf16.msra.mxu0 %v1416
    %1972 = vmatprep.subr.bf16.mxu0 0
    %1973 = vmatpush1.bf16.msra.mxu0 %v1415
    %1974 = vmatprep.subr.bf16.mxu0 0
    %1975 = vmatpush1.bf16.msra.mxu0 %v1414
    %1976 = vmatprep.subr.bf16.mxu0 0
    %1977 = vmatpush1.bf16.msra.mxu0 %v1413
    %1978 = vmatprep.subr.bf16.mxu0 0
    %1979 = vmatpush1.bf16.msra.mxu0 %v1412
    %1980 = vmatprep.subr.bf16.mxu0 0
    %1981 = vmatpush2.bf16.msra.mxu0 %v1427
    %1982 = vmatprep.subr.bf16.mxu0 0
    %1983 = vmatpush2.bf16.msra.mxu0 %v1426
    %1984 = vmatprep.subr.bf16.mxu0 0
    %1985 = vmatpush2.bf16.msra.mxu0 %v1425
    %1986 = vmatprep.subr.bf16.mxu0 0
    %1987 = vmatpush2.bf16.msra.mxu0 %v1424
    %1988 = vmatprep.subr.bf16.mxu0 0
    %1989 = vmatpush2.bf16.msra.mxu0 %v1423
    %1990 = vmatprep.subr.bf16.mxu0 0
    %1991 = vmatpush2.bf16.msra.mxu0 %v1422
    %1992 = vmatprep.subr.bf16.mxu0 0
    %1993 = vmatpush2.bf16.msra.mxu0 %v1421
    %1994 = vmatprep.subr.bf16.mxu0 0
    %1995 = vmatpush2.bf16.msra.mxu0 %v1420
    %1996 = vmatprep.mubr.bf16.mxu0 %v499
    %1997 = vmatmul.mubr.bf16.gmra.mxu0 %v498
    %v1998 = vpop.f32.mrf.mxu0
    %v1999 = vadd.f32 %v1959, %v1998
    %v2000 = vpop.f32.mrf.mxu0
    %v2001 = vpop.f32.mrf.mxu0
    %v2002 = vpop.f32.mrf.mxu0
    %2003 = vdwg.mxu0
    %2004 = vmatprep.subr.bf16.mxu0 0
    %2005 = vmatpush1.bf16.msra.mxu0 %v1435
    %2006 = vmatprep.subr.bf16.mxu0 0
    %2007 = vmatpush1.bf16.msra.mxu0 %v1434
    %2008 = vmatprep.subr.bf16.mxu0 0
    %2009 = vmatpush1.bf16.msra.mxu0 %v1433
    %2010 = vmatprep.subr.bf16.mxu0 0
    %2011 = vmatpush1.bf16.msra.mxu0 %v1432
    %2012 = vmatprep.subr.bf16.mxu0 0
    %2013 = vmatpush1.bf16.msra.mxu0 %v1431
    %2014 = vmatprep.subr.bf16.mxu0 0
    %2015 = vmatpush1.bf16.msra.mxu0 %v1430
    %2016 = vmatprep.subr.bf16.mxu0 0
    %2017 = vmatpush1.bf16.msra.mxu0 %v1429
    %2018 = vmatprep.subr.bf16.mxu0 0
    %2019 = vmatpush1.bf16.msra.mxu0 %v1428
    %2020 = vmatprep.subr.bf16.mxu0 0
    %2021 = vmatpush2.bf16.msra.mxu0 %v1443
    %2022 = vmatprep.subr.bf16.mxu0 0
    %2023 = vmatpush2.bf16.msra.mxu0 %v1442
    %2024 = vmatprep.subr.bf16.mxu0 0
    %2025 = vmatpush2.bf16.msra.mxu0 %v1441
    %2026 = vmatprep.subr.bf16.mxu0 0
    %2027 = vmatpush2.bf16.msra.mxu0 %v1440
    %2028 = vmatprep.subr.bf16.mxu0 0
    %2029 = vmatpush2.bf16.msra.mxu0 %v1439
    %2030 = vmatprep.subr.bf16.mxu0 0
    %2031 = vmatpush2.bf16.msra.mxu0 %v1438
    %2032 = vmatprep.subr.bf16.mxu0 0
    %2033 = vmatpush2.bf16.msra.mxu0 %v1437
    %2034 = vmatprep.subr.bf16.mxu0 0
    %2035 = vmatpush2.bf16.msra.mxu0 %v1436
    %2036 = vmatprep.mubr.bf16.mxu0 %v501
    %2037 = vmatmul.mubr.bf16.gmra.mxu0 %v500
    %v2038 = vpop.f32.mrf.mxu0
    %v2039 = vadd.f32 %v1999, %v2038
    %v2040 = vpop.f32.mrf.mxu0
    %v2041 = vpop.f32.mrf.mxu0
    %v2042 = vpop.f32.mrf.mxu0
    %2043 = vdwg.mxu0
    %2044 = vmatprep.subr.bf16.mxu0 0
    %2045 = vmatpush1.bf16.msra.mxu0 %v1451
    %2046 = vmatprep.subr.bf16.mxu0 0
    %2047 = vmatpush1.bf16.msra.mxu0 %v1450
    %2048 = vmatprep.subr.bf16.mxu0 0
    %2049 = vmatpush1.bf16.msra.mxu0 %v1449
    %2050 = vmatprep.subr.bf16.mxu0 0
    %2051 = vmatpush1.bf16.msra.mxu0 %v1448
    %2052 = vmatprep.subr.bf16.mxu0 0
    %2053 = vmatpush1.bf16.msra.mxu0 %v1447
    %2054 = vmatprep.subr.bf16.mxu0 0
    %2055 = vmatpush1.bf16.msra.mxu0 %v1446
    %2056 = vmatprep.subr.bf16.mxu0 0
    %2057 = vmatpush1.bf16.msra.mxu0 %v1445
    %2058 = vmatprep.subr.bf16.mxu0 0
    %2059 = vmatpush1.bf16.msra.mxu0 %v1444
    %2060 = vmatprep.subr.bf16.mxu0 0
    %2061 = vmatpush2.bf16.msra.mxu0 %v1459
    %2062 = vmatprep.subr.bf16.mxu0 0
    %2063 = vmatpush2.bf16.msra.mxu0 %v1458
    %2064 = vmatprep.subr.bf16.mxu0 0
    %2065 = vmatpush2.bf16.msra.mxu0 %v1457
    %2066 = vmatprep.subr.bf16.mxu0 0
    %2067 = vmatpush2.bf16.msra.mxu0 %v1456
    %2068 = vmatprep.subr.bf16.mxu0 0
    %2069 = vmatpush2.bf16.msra.mxu0 %v1455
    %2070 = vmatprep.subr.bf16.mxu0 0
    %2071 = vmatpush2.bf16.msra.mxu0 %v1454
    %2072 = vmatprep.subr.bf16.mxu0 0
    %2073 = vmatpush2.bf16.msra.mxu0 %v1453
    %2074 = vmatprep.subr.bf16.mxu0 0
    %2075 = vmatpush2.bf16.msra.mxu0 %v1452
    %2076 = vmatprep.mubr.bf16.mxu0 %v503
    %2077 = vmatmul.mubr.bf16.gmra.mxu0 %v502
    %v2078 = vpop.f32.mrf.mxu0
    %v2079 = vadd.f32 %v2039, %v2078
    %v2080 = vpop.f32.mrf.mxu0
    %v2081 = vpop.f32.mrf.mxu0
    %v2082 = vpop.f32.mrf.mxu0
    %2083 = vdwg.mxu0
    %2084 = vmatprep.subr.bf16.mxu0 0
    %2085 = vmatpush1.bf16.msra.mxu0 %v1467
    %2086 = vmatprep.subr.bf16.mxu0 0
    %2087 = vmatpush1.bf16.msra.mxu0 %v1466
    %2088 = vmatprep.subr.bf16.mxu0 0
    %2089 = vmatpush1.bf16.msra.mxu0 %v1465
    %2090 = vmatprep.subr.bf16.mxu0 0
    %2091 = vmatpush1.bf16.msra.mxu0 %v1464
    %2092 = vmatprep.subr.bf16.mxu0 0
    %2093 = vmatpush1.bf16.msra.mxu0 %v1463
    %2094 = vmatprep.subr.bf16.mxu0 0
    %2095 = vmatpush1.bf16.msra.mxu0 %v1462
    %2096 = vmatprep.subr.bf16.mxu0 0
    %2097 = vmatpush1.bf16.msra.mxu0 %v1461
    %2098 = vmatprep.subr.bf16.mxu0 0
    %2099 = vmatpush1.bf16.msra.mxu0 %v1460
    %2100 = vmatprep.subr.bf16.mxu0 0
    %2101 = vmatpush2.bf16.msra.mxu0 %v1475
    %2102 = vmatprep.subr.bf16.mxu0 0
    %2103 = vmatpush2.bf16.msra.mxu0 %v1474
    %2104 = vmatprep.subr.bf16.mxu0 0
    %2105 = vmatpush2.bf16.msra.mxu0 %v1473
    %2106 = vmatprep.subr.bf16.mxu0 0
    %2107 = vmatpush2.bf16.msra.mxu0 %v1472
    %2108 = vmatprep.subr.bf16.mxu0 0
    %2109 = vmatpush2.bf16.msra.mxu0 %v1471
    %2110 = vmatprep.subr.bf16.mxu0 0
    %2111 = vmatpush2.bf16.msra.mxu0 %v1470
    %2112 = vmatprep.subr.bf16.mxu0 0
    %2113 = vmatpush2.bf16.msra.mxu0 %v1469
    %2114 = vmatprep.subr.bf16.mxu0 0
    %2115 = vmatpush2.bf16.msra.mxu0 %v1468
    %2116 = vmatprep.mubr.bf16.mxu0 %v505
    %2117 = vmatmul.mubr.bf16.gmra.mxu0 %v504
    %v2118 = vpop.f32.mrf.mxu0
    %v2119 = vadd.f32 %v2079, %v2118
    %v2120 = vpop.f32.mrf.mxu0
    %v2121 = vpop.f32.mrf.mxu0
    %v2122 = vpop.f32.mrf.mxu0
    %2123 = vdwg.mxu0
    %2124 = vmatprep.subr.bf16.mxu0 0
    %2125 = vmatpush1.bf16.msra.mxu0 %v1483
    %2126 = vmatprep.subr.bf16.mxu0 0
    %2127 = vmatpush1.bf16.msra.mxu0 %v1482
    %2128 = vmatprep.subr.bf16.mxu0 0
    %2129 = vmatpush1.bf16.msra.mxu0 %v1481
    %2130 = vmatprep.subr.bf16.mxu0 0
    %2131 = vmatpush1.bf16.msra.mxu0 %v1480
    %2132 = vmatprep.subr.bf16.mxu0 0
    %2133 = vmatpush1.bf16.msra.mxu0 %v1479
    %2134 = vmatprep.subr.bf16.mxu0 0
    %2135 = vmatpush1.bf16.msra.mxu0 %v1478
    %2136 = vmatprep.subr.bf16.mxu0 0
    %2137 = vmatpush1.bf16.msra.mxu0 %v1477
    %2138 = vmatprep.subr.bf16.mxu0 0
    %2139 = vmatpush1.bf16.msra.mxu0 %v1476
    %2140 = vmatprep.subr.bf16.mxu0 0
    %2141 = vmatpush2.bf16.msra.mxu0 %v1491
    %2142 = vmatprep.subr.bf16.mxu0 0
    %2143 = vmatpush2.bf16.msra.mxu0 %v1490
    %2144 = vmatprep.subr.bf16.mxu0 0
    %2145 = vmatpush2.bf16.msra.mxu0 %v1489
    %2146 = vmatprep.subr.bf16.mxu0 0
    %2147 = vmatpush2.bf16.msra.mxu0 %v1488
    %2148 = vmatprep.subr.bf16.mxu0 0
    %2149 = vmatpush2.bf16.msra.mxu0 %v1487
    %2150 = vmatprep.subr.bf16.mxu0 0
    %2151 = vmatpush2.bf16.msra.mxu0 %v1486
    %2152 = vmatprep.subr.bf16.mxu0 0
    %2153 = vmatpush2.bf16.msra.mxu0 %v1485
    %2154 = vmatprep.subr.bf16.mxu0 0
    %2155 = vmatpush2.bf16.msra.mxu0 %v1484
    %2156 = vmatprep.mubr.bf16.mxu0 %v507
    %2157 = vmatmul.mubr.bf16.gmra.mxu0 %v506
    %v2158 = vpop.f32.mrf.mxu0
    %v2159 = vadd.f32 %v2119, %v2158
    %v2160 = vpop.f32.mrf.mxu0
    %v2161 = vpop.f32.mrf.mxu0
    %v2162 = vpop.f32.mrf.mxu0
    %2163 = vdwg.mxu0
    %2164 = vst [vmem:[#allocation7] sm:$0xff] %v2159
    %2165 = vmax.xlane.f32.xlu0 %v2159
    %v2166 = vpop.xlane.xlu0 %2165
    %v2167 = vsub.f32 %v2159, %v2166
    %v2168 = vmul.f32 %v2167, 1.442695
    %v2169 = vpow.pop %v2168
    %2170 = vadd.xlane.f32.xlu0 %v2169
    %v2171 = vpop.xlane.xlu0 %2170
    %v2172 = vrcp.pop %v2171
    %v2173 = vmul.f32 %v2169, %v2172
    %2174 = vst [vmem:[#allocation8] sm:$0xff] %v2173
    // Predicated region
    $region22: #{tpu_custom_call.1} parent=1 // pred_check
      _
    $region23: #{tpu_custom_call.1} parent=1 // pred_check_branch
      %2176 = sbr.rel (0) target = $region25
    $region24: #{tpu_custom_call.1} parent=1 // pred_region
      %s2178 = ssub.s32 128, 128
      %2179 = vsyncadd [#allocation4], %s2178
      %s2181 = sshll.u32 [#allocation7], 4
      %s2182 = int_to_ptr.vmem [resolvable:$true] %s2181
      %2184 = dma.vmem_to_hbm [thread:$0]  %s2182, 128, %s3, [#allocation4]
    $region25: #{tpu_custom_call.1} parent=1 // pred_fallthru
      _
    // Predicated region
    $region26: #{tpu_custom_call.1} parent=1 // pred_check
      _
    $region27: #{tpu_custom_call.1} parent=1 // pred_check_branch
      %2186 = sbr.rel (0) target = $region29
    $region28: #{tpu_custom_call.1} parent=1 // pred_region
      %s2188 = ssub.s32 128, 128
      %2189 = vsyncadd [#allocation9], %s2188
      %s2191 = sshll.u32 [#allocation8], 4
      %s2192 = int_to_ptr.vmem [resolvable:$true] %s2191
      %2194 = dma.vmem_to_hbm [thread:$0]  %s2192, 128, %s4, [#allocation9]
    $region29: #{tpu_custom_call.1} parent=1 // pred_fallthru
      _
    // Predicated region
    $region30: #{tpu_custom_call.1} parent=1 // pred_check
      _
    $region31: #{tpu_custom_call.1} parent=1 // pred_check_branch
      %2196 = sbr.rel (0) target = $region33
    $region32: #{tpu_custom_call.1} parent=1 // pred_region
      %2197 = dma.done [#allocation4], 128
    $region33: #{tpu_custom_call.1} parent=1 // pred_fallthru
      _
    // Predicated region
    $region34: #{tpu_custom_call.1} parent=1 // pred_check
      _
    $region35: #{tpu_custom_call.1} parent=1 // pred_check_branch
      %2199 = sbr.rel (0) target = $region37
    $region36: #{tpu_custom_call.1} parent=1 // pred_region
      %2200 = dma.done [#allocation9], 128
    $region37: #{tpu_custom_call.1} parent=1 // pred_fallthru
      _
    %2201 = vsyncpa [#allocation3], 1
    %2202 = vsyncpa [#allocation6], 1
    %2203 = vsyncpa [#allocation4], 1
    %2204 = vsyncpa [#allocation9], 1

</llo_original>
